<compile_context>
chip_gen: v6e
topology: v6e:2x2x1
jax: 0.10.0
libtpu: 0.0.40
codegen_flags: <defaults>
</compile_context>

<pallas_src>
import jax
import jax.numpy as jnp
from jax import lax
from jax.experimental import pallas as pl
from jax.experimental.pallas import tpu as pltpu


# ----------------------------------------------------------------------------
# Fully fused encoder kernel: all conv blocks + MLP head, one batch element
# per grid program, everything resident in VMEM/vregs.
# ----------------------------------------------------------------------------
def _make_encoder_kernel(num_blocks):
    def kernel(*refs):
        x_ref = refs[0]
        conv_refs = refs[1:1 + 2 * num_blocks]
        w1_ref, b1_ref, w2_ref, b2_ref, w3_ref, b3_ref = refs[1 + 2 * num_blocks:-1]
        o_ref = refs[-1]

        # running activation for this batch element, kept in f32 vregs
        x = x_ref[0].astype(jnp.float32)                     # (V, C)

        for i in range(num_blocks):
            w = conv_refs[2 * i][...]                        # (K*C, Cout) bf16
            b = conv_refs[2 * i + 1][...]                    # (1, Cout)   f32
            V, C = x.shape
            K = w.shape[0] // C

            # ---- in-kernel ring-spiral gather (no HBM gather) ----
            # g[v, k*C:(k+1)*C] = x[(v + k) % V, :]
            # TODO(synk): arbitrary template spirals would need scalar-prefetched
            #             indices (PrefetchScalarGridSpec) + in-kernel gather;
            #             the synthetic ring template is baked in statically.
            xb = x.astype(jnp.bfloat16)
            chunks = [xb]
            for k in range(1, K):
                chunks.append(jnp.concatenate([xb[k:, :], xb[:k, :]], axis=0))
            g = jnp.concatenate(chunks, axis=1)              # (V, K*C) bf16

            # ---- spiral conv + bias + ReLU (MXU bf16, f32 accumulate) ----
            y = jnp.dot(g, w, preferred_element_type=jnp.float32) + b
            y = jnp.maximum(y, 0.0)                          # (V, Cout) f32

            # ---- 2:1 vertex-pair average pool ----
            # Tiny in-register selection matmul (iota-built constant); the
            # MXU has plenty of slack and nothing touches HBM.
            V2 = V // 2
            r = lax.broadcasted_iota(jnp.int32, (V2, V), 0)
            c = lax.broadcasted_iota(jnp.int32, (V2, V), 1)
            pool = jnp.where((c == 2 * r) | (c == 2 * r + 1), 0.5, 0.0)
            pool = pool.astype(jnp.float32)
            x = jnp.dot(pool, y, preferred_element_type=jnp.float32)   # (V2, Cout)

        # ---- flatten (V_last, C_last) -> (1, F) in vertex-major order ----
        # (matches torch .view(bsz, -1)); V_last is small so static slices
        # + lane-concat are cheap and guaranteed to lower.
        V_last = x.shape[0]
        z = jnp.concatenate([x[v:v + 1, :] for v in range(V_last)], axis=1)

        # ---- fused 3-layer MLP head (intermediates never leave vregs) ----
        h = jnp.dot(z.astype(jnp.bfloat16), w1_ref[...],
                    preferred_element_type=jnp.float32) + b1_ref[...]
        h = jnp.maximum(h, 0.0)
        h = jnp.dot(h.astype(jnp.bfloat16), w2_ref[...],
                    preferred_element_type=jnp.float32) + b2_ref[...]
        h = jnp.maximum(h, 0.0)
        h = jnp.dot(h.astype(jnp.bfloat16), w3_ref[...],
                    preferred_element_type=jnp.float32) + b3_ref[...]
        # final (1, latent) store is lane-sparse but it is the only HBM store
        # of the whole kernel and is tiny.
        o_ref[...] = h[None].astype(o_ref.dtype)             # (1, 1, L)

    return kernel


# ----------------------------------------------------------------------------
# Wrapper: builds specs, cost estimate and the single pallas_call.
# ----------------------------------------------------------------------------
@jax.jit
def mesh_conv_encoder_forward(x, params):
    """Equivalent of MeshConvEncoder.forward.  x: (B, V, C_in) f32."""
    assert x.ndim == 3
    B, V0, C0 = x.shape
    blocks = params["conv_blocks"]
    proj = params["proj"]
    num_blocks = len(blocks)

    inputs = [x]
    in_specs = [pl.BlockSpec((1, V0, C0), lambda b: (b, 0, 0))]
    flops_per_item = 0
    param_bytes = 0

    v, c = V0, C0
    for blk in blocks:
        w = blk["w"].astype(jnp.bfloat16)
        bias = blk["b"].astype(jnp.float32).reshape(1, -1)
        kc, cout = w.shape
        assert kc % c == 0, "weight rows must be spiral_len * in_channels"
        assert v % 2 == 0, "pair-average downsample needs an even vertex count"
        inputs += [w, bias]
        in_specs += [pl.BlockSpec((kc, cout), lambda b: (0, 0)),
                     pl.BlockSpec((1, cout), lambda b: (0, 0))]
        flops_per_item += 2 * v * kc * cout + 2 * v * cout          # conv + epilogue
        flops_per_item += 2 * (v // 2) * v * cout                   # pair-pool matmul
        param_bytes += kc * cout * 2 + cout * 4
        v, c = v // 2, cout

    feat = v * c
    assert proj[0][0].shape[0] == feat, "MLP input must match flattened conv output"
    latent = proj[-1][0].shape[1]
    for (w, bias) in proj:
        w = w.astype(jnp.bfloat16)
        biasr = bias.astype(jnp.float32).reshape(1, -1)
        fin, fout = w.shape
        inputs += [w, biasr]
        in_specs += [pl.BlockSpec((fin, fout), lambda b: (0, 0)),
                     pl.BlockSpec((1, fout), lambda b: (0, 0))]
        flops_per_item += 2 * fin * fout + 2 * fout
        param_bytes += fin * fout * 2 + fout * 4

    # Honest cost estimate: x read + params + output (no more XLA gather /
    # even-odd copies / inter-block HBM round trips).
    cost = pl.CostEstimate(
        flops=B * flops_per_item,
        transcendentals=0,
        bytes_accessed=B * V0 * C0 * 4 + param_bytes + B * latent * 4,
    )
    # Explicit VMEM limit: the working set is only KBs; keep the limit within
    # v5e's 16 MiB scoped default and well under v7x's per-TC share of 64 MiB.
    vmem_limit = int(min(max(2 * (V0 * C0 * 4 + param_bytes + latent * 4)
                             + (2 << 20), 4 << 20), 16 << 20))

    # Grid over batch; "parallel" lets v7x's 2 TensorCores split batch items.
    # TODO(synk): for B == 1 a vertex-split grid would be needed to occupy
    #             both v7x TensorCores; not done here.
    out = pl.pallas_call(
        _make_encoder_kernel(num_blocks),
        grid=(B,),
        out_shape=jax.ShapeDtypeStruct((B, 1, latent), jnp.float32),
        in_specs=in_specs,
        out_specs=pl.BlockSpec((1, 1, latent), lambda b: (b, 0, 0)),
        compiler_params=pltpu.CompilerParams(
            dimension_semantics=("parallel",),
            vmem_limit_bytes=vmem_limit),
        cost_estimate=cost,
    )(*inputs)

    # TODO(synk): config.norm_method normalization inside the MLP omitted
    #             (assumed 'none'); latent_activation assumed None (identity).
    return out.reshape(B, latent)


# ----------------------------------------------------------------------------
# Deterministic parameter / template construction (synthetic, no files)
# ----------------------------------------------------------------------------
def init_params(key, *, in_channels, hidden_channels, latent_channels,
                n_verts, spiral_len):
    params = {"conv_blocks": [], "proj": []}
    c_in = in_channels
    v = n_verts
    keys = jax.random.split(key, len(hidden_channels) + 3)

    for li, c_out in enumerate(hidden_channels):
        k_w, k_b = jax.random.split(keys[li])
        # synthetic spiral neighborhoods: ring offsets around each vertex
        spiral_idx = (jnp.arange(v)[:, None] + jnp.arange(spiral_len)[None, :]) % v
        w = (0.1 * jax.random.normal(k_w, (spiral_len * c_in, c_out), jnp.float32)
             ).astype(jnp.bfloat16)
        b = 0.01 * jax.random.normal(k_b, (c_out,), jnp.float32)
        params["conv_blocks"].append(
            {"spiral_idx": spiral_idx.astype(jnp.int32), "w": w, "b": b})
        c_in = c_out
        v = v // 2     # synthetic downsample: 2:1 vertex-pair average pool

    feat_in = v * hidden_channels[-1]
    mlp_dims = [feat_in, latent_channels * 2, latent_channels * 2, latent_channels]
    for li in range(3):
        k_w, k_b = jax.random.split(keys[len(hidden_channels) + li])
        w = (0.1 * jax.random.normal(
                k_w, (mlp_dims[li], mlp_dims[li + 1]), jnp.float32)
             ).astype(jnp.bfloat16)
        b = 0.01 * jax.random.normal(k_b, (mlp_dims[li + 1],), jnp.float32)
        params["proj"].append((w, b))
    return params


# ----------------------------------------------------------------------------
# Pure-JAX reference (mirrors the bf16-operand / f32-accumulate numerics,
# uses the explicit spiral_idx gather — independently checks the in-kernel
# ring-gather construction).
# ----------------------------------------------------------------------------
def reference_forward(x, params):
    x = x.astype(jnp.bfloat16)
    for blk in params["conv_blocks"]:
        B, V, _ = x.shape
        g = x[:, blk["spiral_idx"], :].reshape(B * V, -1)
        y = jnp.dot(g, blk["w"], preferred_element_type=jnp.float32) + blk["b"]
        y = jnp.maximum(y, 0.0)
        y = jnp.mean(y.reshape(B * V // 2, 2, -1), axis=1)      # 2:1 avg pool
        x = y.astype(jnp.bfloat16).reshape(B, V // 2, -1)
    z = x.reshape(x.shape[0], -1)
    (w1, b1), (w2, b2), (w3, b3) = params["proj"]
    h = jnp.maximum(jnp.dot(z, w1, preferred_element_type=jnp.float32) + b1, 0.0)
    h = jnp.maximum(jnp.dot(h.astype(jnp.bfloat16), w2,
                            preferred_element_type=jnp.float32) + b2, 0.0)
    return jnp.dot(h.astype(jnp.bfloat16), w3,
                   preferred_element_type=jnp.float32) + b3


# ----------------------------------------------------------------------------
if __name__ == "__main__":
    B = 2
    N_VERTS = 64           # template vertices
    IN_CHANNELS = 3        # xyz per vertex
    HIDDEN_CHANNELS = (16, 32)
    LATENT_CHANNELS = 8
    SPIRAL_LEN = 4

    key = jax.random.PRNGKey(0)
    k_params, k_x = jax.random.split(key)
    params = init_params(
        k_params,
        in_channels=IN_CHANNELS,
        hidden_channels=HIDDEN_CHANNELS,
        latent_channels=LATENT_CHANNELS,
        n_verts=N_VERTS,
        spiral_len=SPIRAL_LEN,
    )
    x = jax.random.normal(k_x, (B, N_VERTS, IN_CHANNELS), jnp.float32)

    z = mesh_conv_encoder_forward(x, params)
    z = jax.block_until_ready(z)

    z_ref = reference_forward(x, params)
    assert z.shape == (B, LATENT_CHANNELS), z.shape
    assert jnp.allclose(z, z_ref, atol=5e-2, rtol=2e-2), "mismatch vs reference"

    print("KERNEL_OK")
</pallas_src>

<mosaic_0001>
module attributes {stable_mosaic.version = 11 : i64} {
  func.func @kernel(%arg0: i32, %arg1: memref<1x64x3xf32, #tpu.memory_space<vmem>>, %arg2: memref<12x16xbf16, #tpu.memory_space<vmem>>, %arg3: memref<1x16xf32, #tpu.memory_space<vmem>>, %arg4: memref<64x32xbf16, #tpu.memory_space<vmem>>, %arg5: memref<1x32xf32, #tpu.memory_space<vmem>>, %arg6: memref<512x16xbf16, #tpu.memory_space<vmem>>, %arg7: memref<1x16xf32, #tpu.memory_space<vmem>>, %arg8: memref<16x16xbf16, #tpu.memory_space<vmem>>, %arg9: memref<1x16xf32, #tpu.memory_space<vmem>>, %arg10: memref<16x8xbf16, #tpu.memory_space<vmem>>, %arg11: memref<1x8xf32, #tpu.memory_space<vmem>>, %arg12: memref<1x1x8xf32, #tpu.memory_space<vmem>>) attributes {dimension_semantics = [#tpu.dimension_semantics<parallel>], iteration_bounds = array<i64: 2>, scalar_prefetch = 0 : i64, scratch_operands = 0 : i64, tpu.core_type = #tpu.core_type<tc>, window_params = [{transform_indices = @transform_0, window_bounds = array<i64: 1, 64, 3>}, {pipeline_mode = #tpu.pipeline_mode<synchronous>, transform_indices = @transform_1, window_bounds = array<i64: 12, 16>}, {pipeline_mode = #tpu.pipeline_mode<synchronous>, transform_indices = @transform_2, window_bounds = array<i64: 1, 16>}, {pipeline_mode = #tpu.pipeline_mode<synchronous>, transform_indices = @transform_3, window_bounds = array<i64: 64, 32>}, {pipeline_mode = #tpu.pipeline_mode<synchronous>, transform_indices = @transform_4, window_bounds = array<i64: 1, 32>}, {pipeline_mode = #tpu.pipeline_mode<synchronous>, transform_indices = @transform_5, window_bounds = array<i64: 512, 16>}, {pipeline_mode = #tpu.pipeline_mode<synchronous>, transform_indices = @transform_6, window_bounds = array<i64: 1, 16>}, {pipeline_mode = #tpu.pipeline_mode<synchronous>, transform_indices = @transform_7, window_bounds = array<i64: 16, 16>}, {pipeline_mode = #tpu.pipeline_mode<synchronous>, transform_indices = @transform_8, window_bounds = array<i64: 1, 16>}, {pipeline_mode = #tpu.pipeline_mode<synchronous>, transform_indices = @transform_9, window_bounds = array<i64: 16, 8>}, {pipeline_mode = #tpu.pipeline_mode<synchronous>, transform_indices = @transform_10, window_bounds = array<i64: 1, 8>}, {transform_indices = @transform_11, window_bounds = array<i64: 1, 1, 8>}]} {
    %c0 = arith.constant 0 : index
    %c0_0 = arith.constant 0 : index
    %c0_1 = arith.constant 0 : index
    %0 = vector.load %arg1[%c0, %c0_0, %c0_1] : memref<1x64x3xf32, #tpu.memory_space<vmem>>, vector<1x64x3xf32>
    %1 = vector.shape_cast %0 : vector<1x64x3xf32> to vector<64x3xf32>
    %c0_2 = arith.constant 0 : index
    %c0_3 = arith.constant 0 : index
    %2 = vector.load %arg2[%c0_2, %c0_3] : memref<12x16xbf16, #tpu.memory_space<vmem>>, vector<12x16xbf16>
    %c0_4 = arith.constant 0 : index
    %c0_5 = arith.constant 0 : index
    %3 = vector.load %arg3[%c0_4, %c0_5] : memref<1x16xf32, #tpu.memory_space<vmem>>, vector<1x16xf32>
    %4 = arith.truncf %1 : vector<64x3xf32> to vector<64x3xbf16>
    %5 = vector.extract_strided_slice %4 {offsets = [1, 0], sizes = [63, 3], strides = [1, 1]} : vector<64x3xbf16> to vector<63x3xbf16>
    %6 = vector.extract_strided_slice %4 {offsets = [0, 0], sizes = [1, 3], strides = [1, 1]} : vector<64x3xbf16> to vector<1x3xbf16>
    %7 = tpu.concatenate %5, %6 in 0 : vector<63x3xbf16>, vector<1x3xbf16> -> vector<64x3xbf16>
    %8 = vector.extract_strided_slice %4 {offsets = [2, 0], sizes = [62, 3], strides = [1, 1]} : vector<64x3xbf16> to vector<62x3xbf16>
    %9 = vector.extract_strided_slice %4 {offsets = [0, 0], sizes = [2, 3], strides = [1, 1]} : vector<64x3xbf16> to vector<2x3xbf16>
    %10 = tpu.concatenate %8, %9 in 0 : vector<62x3xbf16>, vector<2x3xbf16> -> vector<64x3xbf16>
    %11 = vector.extract_strided_slice %4 {offsets = [3, 0], sizes = [61, 3], strides = [1, 1]} : vector<64x3xbf16> to vector<61x3xbf16>
    %12 = vector.extract_strided_slice %4 {offsets = [0, 0], sizes = [3, 3], strides = [1, 1]} : vector<64x3xbf16> to vector<3x3xbf16>
    %13 = tpu.concatenate %11, %12 in 0 : vector<61x3xbf16>, vector<3x3xbf16> -> vector<64x3xbf16>
    %14 = tpu.concatenate %4, %7, %10, %13 in 1 : vector<64x3xbf16>, vector<64x3xbf16>, vector<64x3xbf16>, vector<64x3xbf16> -> vector<64x12xbf16>
    %cst = arith.constant dense<0.000000e+00> : vector<64x16xf32>
    %15 = tpu.matmul %14, %2, %cst {dimension_numbers = #tpu.dot_dimension_numbers<[1], [0], [0], [1], [0, 0, 1, 1], [], []>} : vector<64x12xbf16>, vector<12x16xbf16>, vector<64x16xf32> -> vector<64x16xf32>
    %16 = vector.broadcast %3 : vector<1x16xf32> to vector<64x16xf32>
    %17 = arith.addf %15, %16 : vector<64x16xf32>
    %cst_6 = arith.constant 0.000000e+00 : f32
    %18 = vector.broadcast %cst_6 : f32 to vector<64x16xf32>
    %19 = arith.maximumf %17, %18 : vector<64x16xf32>
    %20 = tpu.iota {dimensions = array<i32: 0>} : vector<32x64xi32>
    %21 = tpu.iota {dimensions = array<i32: 1>} : vector<32x64xi32>
    %c2_i32 = arith.constant 2 : i32
    %22 = vector.broadcast %c2_i32 : i32 to vector<32x64xi32>
    %23 = arith.muli %22, %20 : vector<32x64xi32>
    %24 = arith.cmpi eq, %21, %23 : vector<32x64xi32>
    %c2_i32_7 = arith.constant 2 : i32
    %25 = vector.broadcast %c2_i32_7 : i32 to vector<32x64xi32>
    %26 = arith.muli %25, %20 : vector<32x64xi32>
    %c1_i32 = arith.constant 1 : i32
    %27 = vector.broadcast %c1_i32 : i32 to vector<32x64xi32>
    %28 = arith.addi %26, %27 : vector<32x64xi32>
    %29 = arith.cmpi eq, %21, %28 : vector<32x64xi32>
    %30 = arith.ori %24, %29 : vector<32x64xi1>
    %cst_8 = arith.constant 5.000000e-01 : f32
    %cst_9 = arith.constant 0.000000e+00 : f32
    %31 = vector.broadcast %cst_8 : f32 to vector<32x64xf32>
    %32 = vector.broadcast %cst_9 : f32 to vector<32x64xf32>
    %33 = arith.select %30, %31, %32 : vector<32x64xi1>, vector<32x64xf32>
    %cst_10 = arith.constant dense<0.000000e+00> : vector<32x16xf32>
    %34 = tpu.matmul %33, %19, %cst_10 {dimension_numbers = #tpu.dot_dimension_numbers<[1], [0], [0], [1], [0, 0, 1, 1], [], []>} : vector<32x64xf32>, vector<64x16xf32>, vector<32x16xf32> -> vector<32x16xf32>
    %c0_11 = arith.constant 0 : index
    %c0_12 = arith.constant 0 : index
    %35 = vector.load %arg4[%c0_11, %c0_12] : memref<64x32xbf16, #tpu.memory_space<vmem>>, vector<64x32xbf16>
    %c0_13 = arith.constant 0 : index
    %c0_14 = arith.constant 0 : index
    %36 = vector.load %arg5[%c0_13, %c0_14] : memref<1x32xf32, #tpu.memory_space<vmem>>, vector<1x32xf32>
    %37 = arith.truncf %34 : vector<32x16xf32> to vector<32x16xbf16>
    %38 = vector.extract_strided_slice %37 {offsets = [1, 0], sizes = [31, 16], strides = [1, 1]} : vector<32x16xbf16> to vector<31x16xbf16>
    %39 = vector.extract_strided_slice %37 {offsets = [0, 0], sizes = [1, 16], strides = [1, 1]} : vector<32x16xbf16> to vector<1x16xbf16>
    %40 = tpu.concatenate %38, %39 in 0 : vector<31x16xbf16>, vector<1x16xbf16> -> vector<32x16xbf16>
    %41 = vector.extract_strided_slice %37 {offsets = [2, 0], sizes = [30, 16], strides = [1, 1]} : vector<32x16xbf16> to vector<30x16xbf16>
    %42 = vector.extract_strided_slice %37 {offsets = [0, 0], sizes = [2, 16], strides = [1, 1]} : vector<32x16xbf16> to vector<2x16xbf16>
    %43 = tpu.concatenate %41, %42 in 0 : vector<30x16xbf16>, vector<2x16xbf16> -> vector<32x16xbf16>
    %44 = vector.extract_strided_slice %37 {offsets = [3, 0], sizes = [29, 16], strides = [1, 1]} : vector<32x16xbf16> to vector<29x16xbf16>
    %45 = vector.extract_strided_slice %37 {offsets = [0, 0], sizes = [3, 16], strides = [1, 1]} : vector<32x16xbf16> to vector<3x16xbf16>
    %46 = tpu.concatenate %44, %45 in 0 : vector<29x16xbf16>, vector<3x16xbf16> -> vector<32x16xbf16>
    %47 = tpu.concatenate %37, %40, %43, %46 in 1 : vector<32x16xbf16>, vector<32x16xbf16>, vector<32x16xbf16>, vector<32x16xbf16> -> vector<32x64xbf16>
    %cst_15 = arith.constant dense<0.000000e+00> : vector<32x32xf32>
    %48 = tpu.matmul %47, %35, %cst_15 {dimension_numbers = #tpu.dot_dimension_numbers<[1], [0], [0], [1], [0, 0, 1, 1], [], []>} : vector<32x64xbf16>, vector<64x32xbf16>, vector<32x32xf32> -> vector<32x32xf32>
    %49 = vector.broadcast %36 : vector<1x32xf32> to vector<32x32xf32>
    %50 = arith.addf %48, %49 : vector<32x32xf32>
    %cst_16 = arith.constant 0.000000e+00 : f32
    %51 = vector.broadcast %cst_16 : f32 to vector<32x32xf32>
    %52 = arith.maximumf %50, %51 : vector<32x32xf32>
    %53 = tpu.iota {dimensions = array<i32: 0>} : vector<16x32xi32>
    %54 = tpu.iota {dimensions = array<i32: 1>} : vector<16x32xi32>
    %c2_i32_17 = arith.constant 2 : i32
    %55 = vector.broadcast %c2_i32_17 : i32 to vector<16x32xi32>
    %56 = arith.muli %55, %53 : vector<16x32xi32>
    %57 = arith.cmpi eq, %54, %56 : vector<16x32xi32>
    %c2_i32_18 = arith.constant 2 : i32
    %58 = vector.broadcast %c2_i32_18 : i32 to vector<16x32xi32>
    %59 = arith.muli %58, %53 : vector<16x32xi32>
    %c1_i32_19 = arith.constant 1 : i32
    %60 = vector.broadcast %c1_i32_19 : i32 to vector<16x32xi32>
    %61 = arith.addi %59, %60 : vector<16x32xi32>
    %62 = arith.cmpi eq, %54, %61 : vector<16x32xi32>
    %63 = arith.ori %57, %62 : vector<16x32xi1>
    %cst_20 = arith.constant 5.000000e-01 : f32
    %cst_21 = arith.constant 0.000000e+00 : f32
    %64 = vector.broadcast %cst_20 : f32 to vector<16x32xf32>
    %65 = vector.broadcast %cst_21 : f32 to vector<16x32xf32>
    %66 = arith.select %63, %64, %65 : vector<16x32xi1>, vector<16x32xf32>
    %cst_22 = arith.constant dense<0.000000e+00> : vector<16x32xf32>
    %67 = tpu.matmul %66, %52, %cst_22 {dimension_numbers = #tpu.dot_dimension_numbers<[1], [0], [0], [1], [0, 0, 1, 1], [], []>} : vector<16x32xf32>, vector<32x32xf32>, vector<16x32xf32> -> vector<16x32xf32>
    %68 = vector.extract_strided_slice %67 {offsets = [0, 0], sizes = [1, 32], strides = [1, 1]} : vector<16x32xf32> to vector<1x32xf32>
    %69 = vector.extract_strided_slice %67 {offsets = [1, 0], sizes = [1, 32], strides = [1, 1]} : vector<16x32xf32> to vector<1x32xf32>
    %70 = vector.extract_strided_slice %67 {offsets = [2, 0], sizes = [1, 32], strides = [1, 1]} : vector<16x32xf32> to vector<1x32xf32>
    %71 = vector.extract_strided_slice %67 {offsets = [3, 0], sizes = [1, 32], strides = [1, 1]} : vector<16x32xf32> to vector<1x32xf32>
    %72 = vector.extract_strided_slice %67 {offsets = [4, 0], sizes = [1, 32], strides = [1, 1]} : vector<16x32xf32> to vector<1x32xf32>
    %73 = vector.extract_strided_slice %67 {offsets = [5, 0], sizes = [1, 32], strides = [1, 1]} : vector<16x32xf32> to vector<1x32xf32>
    %74 = vector.extract_strided_slice %67 {offsets = [6, 0], sizes = [1, 32], strides = [1, 1]} : vector<16x32xf32> to vector<1x32xf32>
    %75 = vector.extract_strided_slice %67 {offsets = [7, 0], sizes = [1, 32], strides = [1, 1]} : vector<16x32xf32> to vector<1x32xf32>
    %76 = vector.extract_strided_slice %67 {offsets = [8, 0], sizes = [1, 32], strides = [1, 1]} : vector<16x32xf32> to vector<1x32xf32>
    %77 = vector.extract_strided_slice %67 {offsets = [9, 0], sizes = [1, 32], strides = [1, 1]} : vector<16x32xf32> to vector<1x32xf32>
    %78 = vector.extract_strided_slice %67 {offsets = [10, 0], sizes = [1, 32], strides = [1, 1]} : vector<16x32xf32> to vector<1x32xf32>
    %79 = vector.extract_strided_slice %67 {offsets = [11, 0], sizes = [1, 32], strides = [1, 1]} : vector<16x32xf32> to vector<1x32xf32>
    %80 = vector.extract_strided_slice %67 {offsets = [12, 0], sizes = [1, 32], strides = [1, 1]} : vector<16x32xf32> to vector<1x32xf32>
    %81 = vector.extract_strided_slice %67 {offsets = [13, 0], sizes = [1, 32], strides = [1, 1]} : vector<16x32xf32> to vector<1x32xf32>
    %82 = vector.extract_strided_slice %67 {offsets = [14, 0], sizes = [1, 32], strides = [1, 1]} : vector<16x32xf32> to vector<1x32xf32>
    %83 = vector.extract_strided_slice %67 {offsets = [15, 0], sizes = [1, 32], strides = [1, 1]} : vector<16x32xf32> to vector<1x32xf32>
    %84 = tpu.concatenate %68, %69, %70, %71, %72, %73, %74, %75, %76, %77, %78, %79, %80, %81, %82, %83 in 1 : vector<1x32xf32>, vector<1x32xf32>, vector<1x32xf32>, vector<1x32xf32>, vector<1x32xf32>, vector<1x32xf32>, vector<1x32xf32>, vector<1x32xf32>, vector<1x32xf32>, vector<1x32xf32>, vector<1x32xf32>, vector<1x32xf32>, vector<1x32xf32>, vector<1x32xf32>, vector<1x32xf32>, vector<1x32xf32> -> vector<1x512xf32>
    %85 = arith.truncf %84 : vector<1x512xf32> to vector<1x512xbf16>
    %c0_23 = arith.constant 0 : index
    %c0_24 = arith.constant 0 : index
    %86 = vector.load %arg6[%c0_23, %c0_24] : memref<512x16xbf16, #tpu.memory_space<vmem>>, vector<512x16xbf16>
    %cst_25 = arith.constant dense<0.000000e+00> : vector<1x16xf32>
    %87 = tpu.matmul %85, %86, %cst_25 {dimension_numbers = #tpu.dot_dimension_numbers<[1], [0], [0], [1], [0, 0, 1, 1], [], []>} : vector<1x512xbf16>, vector<512x16xbf16>, vector<1x16xf32> -> vector<1x16xf32>
    %c0_26 = arith.constant 0 : index
    %c0_27 = arith.constant 0 : index
    %88 = vector.load %arg7[%c0_26, %c0_27] : memref<1x16xf32, #tpu.memory_space<vmem>>, vector<1x16xf32>
    %89 = arith.addf %87, %88 : vector<1x16xf32>
    %cst_28 = arith.constant 0.000000e+00 : f32
    %90 = vector.broadcast %cst_28 : f32 to vector<1x16xf32>
    %91 = arith.maximumf %89, %90 : vector<1x16xf32>
    %92 = arith.truncf %91 : vector<1x16xf32> to vector<1x16xbf16>
    %c0_29 = arith.constant 0 : index
    %c0_30 = arith.constant 0 : index
    %93 = vector.load %arg8[%c0_29, %c0_30] : memref<16x16xbf16, #tpu.memory_space<vmem>>, vector<16x16xbf16>
    %cst_31 = arith.constant dense<0.000000e+00> : vector<1x16xf32>
    %94 = tpu.matmul %92, %93, %cst_31 {dimension_numbers = #tpu.dot_dimension_numbers<[1], [0], [0], [1], [0, 0, 1, 1], [], []>} : vector<1x16xbf16>, vector<16x16xbf16>, vector<1x16xf32> -> vector<1x16xf32>
    %c0_32 = arith.constant 0 : index
    %c0_33 = arith.constant 0 : index
    %95 = vector.load %arg9[%c0_32, %c0_33] : memref<1x16xf32, #tpu.memory_space<vmem>>, vector<1x16xf32>
    %96 = arith.addf %94, %95 : vector<1x16xf32>
    %cst_34 = arith.constant 0.000000e+00 : f32
    %97 = vector.broadcast %cst_34 : f32 to vector<1x16xf32>
    %98 = arith.maximumf %96, %97 : vector<1x16xf32>
    %99 = arith.truncf %98 : vector<1x16xf32> to vector<1x16xbf16>
    %c0_35 = arith.constant 0 : index
    %c0_36 = arith.constant 0 : index
    %100 = vector.load %arg10[%c0_35, %c0_36] : memref<16x8xbf16, #tpu.memory_space<vmem>>, vector<16x8xbf16>
    %cst_37 = arith.constant dense<0.000000e+00> : vector<1x8xf32>
    %101 = tpu.matmul %99, %100, %cst_37 {dimension_numbers = #tpu.dot_dimension_numbers<[1], [0], [0], [1], [0, 0, 1, 1], [], []>} : vector<1x16xbf16>, vector<16x8xbf16>, vector<1x8xf32> -> vector<1x8xf32>
    %c0_38 = arith.constant 0 : index
    %c0_39 = arith.constant 0 : index
    %102 = vector.load %arg11[%c0_38, %c0_39] : memref<1x8xf32, #tpu.memory_space<vmem>>, vector<1x8xf32>
    %103 = arith.addf %101, %102 : vector<1x8xf32>
    %104 = vector.shape_cast %103 : vector<1x8xf32> to vector<1x1x8xf32>
    %c0_40 = arith.constant 0 : index
    %c0_41 = arith.constant 0 : index
    %c0_42 = arith.constant 0 : index
    %105 = vector.load %arg12[%c0_40, %c0_41, %c0_42] : memref<1x1x8xf32, #tpu.memory_space<vmem>>, vector<1x1x8xf32>
    tpu.vector_store %arg12[%c0_40, %c0_41, %c0_42], %104 {strides = array<i32>} : memref<1x1x8xf32, #tpu.memory_space<vmem>>, vector<1x1x8xf32>,
    return
  }
  func.func @transform_0(%arg0: i32) -> (i32, i32, i32) {
    %c0_i32 = arith.constant 0 : i32
    %c0_i32_0 = arith.constant 0 : i32
    %c0_i32_1 = arith.constant 0 : i32
    return %arg0, %c0_i32, %c0_i32_0 : i32, i32, i32
  }
  func.func @transform_1(%arg0: i32) -> (i32, i32) {
    %c0_i32 = arith.constant 0 : i32
    %c0_i32_0 = arith.constant 0 : i32
    %c0_i32_1 = arith.constant 0 : i32
    return %c0_i32, %c0_i32_0 : i32, i32
  }
  func.func @transform_2(%arg0: i32) -> (i32, i32) {
    %c0_i32 = arith.constant 0 : i32
    %c0_i32_0 = arith.constant 0 : i32
    %c0_i32_1 = arith.constant 0 : i32
    return %c0_i32, %c0_i32_0 : i32, i32
  }
  func.func @transform_3(%arg0: i32) -> (i32, i32) {
    %c0_i32 = arith.constant 0 : i32
    %c0_i32_0 = arith.constant 0 : i32
    %c0_i32_1 = arith.constant 0 : i32
    return %c0_i32, %c0_i32_0 : i32, i32
  }
  func.func @transform_4(%arg0: i32) -> (i32, i32) {
    %c0_i32 = arith.constant 0 : i32
    %c0_i32_0 = arith.constant 0 : i32
    %c0_i32_1 = arith.constant 0 : i32
    return %c0_i32, %c0_i32_0 : i32, i32
  }
  func.func @transform_5(%arg0: i32) -> (i32, i32) {
    %c0_i32 = arith.constant 0 : i32
    %c0_i32_0 = arith.constant 0 : i32
    %c0_i32_1 = arith.constant 0 : i32
    return %c0_i32, %c0_i32_0 : i32, i32
  }
  func.func @transform_6(%arg0: i32) -> (i32, i32) {
    %c0_i32 = arith.constant 0 : i32
    %c0_i32_0 = arith.constant 0 : i32
    %c0_i32_1 = arith.constant 0 : i32
    return %c0_i32, %c0_i32_0 : i32, i32
  }
  func.func @transform_7(%arg0: i32) -> (i32, i32) {
    %c0_i32 = arith.constant 0 : i32
    %c0_i32_0 = arith.constant 0 : i32
    %c0_i32_1 = arith.constant 0 : i32
    return %c0_i32, %c0_i32_0 : i32, i32
  }
  func.func @transform_8(%arg0: i32) -> (i32, i32) {
    %c0_i32 = arith.constant 0 : i32
    %c0_i32_0 = arith.constant 0 : i32
    %c0_i32_1 = arith.constant 0 : i32
    return %c0_i32, %c0_i32_0 : i32, i32
  }
  func.func @transform_9(%arg0: i32) -> (i32, i32) {
    %c0_i32 = arith.constant 0 : i32
    %c0_i32_0 = arith.constant 0 : i32
    %c0_i32_1 = arith.constant 0 : i32
    return %c0_i32, %c0_i32_0 : i32, i32
  }
  func.func @transform_10(%arg0: i32) -> (i32, i32) {
    %c0_i32 = arith.constant 0 : i32
    %c0_i32_0 = arith.constant 0 : i32
    %c0_i32_1 = arith.constant 0 : i32
    return %c0_i32, %c0_i32_0 : i32, i32
  }
  func.func @transform_11(%arg0: i32) -> (i32, i32, i32) {
    %c0_i32 = arith.constant 0 : i32
    %c0_i32_0 = arith.constant 0 : i32
    %c0_i32_1 = arith.constant 0 : i32
    return %arg0, %c0_i32, %c0_i32_0 : i32, i32, i32
  }
}

</mosaic_0001>

<llo_original>
// kernel: mesh_conv_encoder_forward.1
$region0: #{mesh_conv_encoder_forward.1}
  #allocation0 [shape = 'u32[]', space=smem, size = 0x4, offset = 0x4, fixed_abs, tag = 'smem constant byte address 0x4 - core index']
  #allocation1 [shape = 'u32[144,128]{1,0:T(1,128)}', space=vmem, size = 0x12000, scoped, tag = 'internal scratch']
  %s0 = inlined_call_operand.vmem [shape: f32[2,64,3], index: 0, kind: input, shape index: {}]
  %s1 = inlined_call_operand.vmem [shape: bf16[12,16], index: 1, kind: input, shape index: {}]
  %s2 = inlined_call_operand.vmem [shape: f32[1,16], index: 2, kind: input, shape index: {}]
  %s3 = inlined_call_operand.vmem [shape: bf16[64,32], index: 3, kind: input, shape index: {}]
  %s4 = inlined_call_operand.vmem [shape: f32[1,32], index: 4, kind: input, shape index: {}]
  %s5 = inlined_call_operand.vmem [shape: bf16[512,16], index: 5, kind: input, shape index: {}]
  %s6 = inlined_call_operand.vmem [shape: f32[1,16], index: 6, kind: input, shape index: {}]
  %s7 = inlined_call_operand.vmem [shape: bf16[16,16], index: 7, kind: input, shape index: {}]
  %s8 = inlined_call_operand.vmem [shape: f32[1,16], index: 8, kind: input, shape index: {}]
  %s9 = inlined_call_operand.vmem [shape: bf16[16,8], index: 9, kind: input, shape index: {}]
  %s10 = inlined_call_operand.vmem [shape: f32[1,8], index: 10, kind: input, shape index: {}]
  %s11 = inlined_call_operand.hbm [shape: f32[2,1,8], index: 11, kind: output, shape index: {}]
  %s12 = sld [smem:[#allocation0]]
  $region77: #{mesh_conv_encoder_forward.1} parent=0
    _
  %s14 = ssub.s32 1, %s12
  %s15 = scalar_select 0, %s14, %s12
  $region1: #{mesh_conv_encoder_forward.1} parent=0
    #allocation2 [shape = 'u8[1024]{0}', space=vmem, size = 0x400, scoped, tag = 'output window, operand 0']
    #allocation3 [shape = 's32[2]{0}', space=sflag, size = 0x8, scoped, tag = 'scoped memory for mesh_conv_encoder_forward.1']
    %16 = vsyncpa [#allocation3], 0
    %s17 = scalar_lea.sflag [#allocation3], 1
    %18 = vsyncpa %s17, 0
    loop: start=0, step=1, limit=4
    $region2: #{mesh_conv_encoder_forward.1} parent=1 // loop_pre_header
      _
    $region3: #{mesh_conv_encoder_forward.1} parent=1 // loop_header
      %s20 = sphi 0, %s24
      %p21 = scmp.ge.s32.totalorder %s20, 4
      %s30 = sphi 0, %s32
      %s33 = sphi 0, %s30
      %s34 = sphi 0, %s33
      %s50 = sphi 0, %s34
      %s54 = sphi 0, %s54
      %s56 = sphi 0, %s54
      %s57 = sphi 0, %s56
      %s71 = sphi 0, %s57
      %s75 = sphi 0, %s75
      %s77 = sphi 0, %s75
      %s78 = sphi 0, %s77
      %s92 = sphi 0, %s78
      %s96 = sphi 0, %s96
      %s98 = sphi 0, %s96
      %s99 = sphi 0, %s98
      %s113 = sphi 0, %s99
      %s117 = sphi 0, %s117
      %s119 = sphi 0, %s117
      %s120 = sphi 0, %s119
      %s134 = sphi 0, %s120
      %s138 = sphi 0, %s138
      %s140 = sphi 0, %s138
      %s141 = sphi 0, %s140
      %s155 = sphi 0, %s141
      %s159 = sphi 0, %s159
      %s161 = sphi 0, %s159
      %s162 = sphi 0, %s161
      %s176 = sphi 0, %s162
      %s180 = sphi 0, %s180
      %s182 = sphi 0, %s180
      %s183 = sphi 0, %s182
      %s197 = sphi 0, %s183
      %s201 = sphi 0, %s201
      %s203 = sphi 0, %s201
      %s204 = sphi 0, %s203
      %s218 = sphi 0, %s204
      %s222 = sphi 0, %s222
      %s224 = sphi 0, %s222
      %s225 = sphi 0, %s224
      %s239 = sphi 0, %s225
      %s243 = sphi 0, %s243
      %s245 = sphi 0, %s243
      %s246 = sphi 0, %s245
      %s260 = sphi 0, %s246
      %s266 = sphi 0, %s268
      %s269 = sphi 0, %s266
      %s270 = sphi 0, %s269
      %s286 = sphi 0, %s270
    $region4: #{mesh_conv_encoder_forward.1} parent=1 // loop_header_branch
      %23 = sbr.rel (%p21) target = $region8
    $region5: #{mesh_conv_encoder_forward.1} parent=1 // loop_body
      %s25 = ssub.s32 %s20, 1
      %s26 = ssub.s32 %s20, 2
      %s27 = sadd.s32 %s20, 1
      %s28 = ssub.s32 %s20, %s27
      %p29 = scmp.eq.s32.totalorder %s28, 0
      %s31 = sadd.s32 %s30, 1
      %s32 = scalar_select %p29, %s30, %s31
      %p35 = pneg %p29
      %p36 = scmp.eq.s32.totalorder %s20, 1
      %p37 = por %p35, %p36
      %p38 = scmp.ne.s32.totalorder %s30, %s33
      %p39 = scmp.eq.s32.totalorder %s20, 0
      %p40 = por %p38, %p39
      %p41 = scmp.ne.s32.totalorder %s30, %s33
      %p42 = scmp.eq.s32.totalorder %s25, 1
      %p43 = por %p41, %p42
      %p44 = scmp.ne.s32.totalorder %s33, %s34
      %p45 = scmp.eq.s32.totalorder %s25, 0
      %p46 = por %p44, %p45
      %p47 = scmp.ne.s32.totalorder %s33, %s34
      %p48 = scmp.eq.s32.totalorder %s26, 1
      %p49 = por %p47, %p48
      %p51 = scmp.ne.s32.totalorder %s34, %s50
      %p52 = scmp.eq.s32.totalorder %s26, 0
      %p53 = por %p51, %p52
      %s55 = sadd.s32 %s54, 1
      %p58 = scmp.eq.s32.totalorder %s20, 1
      %p59 = scmp.ne.s32.totalorder %s54, %s56
      %p60 = scmp.eq.s32.totalorder %s20, 0
      %p61 = por %p59, %p60
      %p62 = scmp.ne.s32.totalorder %s54, %s56
      %p63 = scmp.eq.s32.totalorder %s25, 1
      %p64 = por %p62, %p63
      %p65 = scmp.ne.s32.totalorder %s56, %s57
      %p66 = scmp.eq.s32.totalorder %s25, 0
      %p67 = por %p65, %p66
      %p68 = scmp.ne.s32.totalorder %s56, %s57
      %p69 = scmp.eq.s32.totalorder %s26, 1
      %p70 = por %p68, %p69
      %p72 = scmp.ne.s32.totalorder %s57, %s71
      %p73 = scmp.eq.s32.totalorder %s26, 0
      %p74 = por %p72, %p73
      %s76 = sadd.s32 %s75, 1
      %p79 = scmp.eq.s32.totalorder %s20, 1
      %p80 = scmp.ne.s32.totalorder %s75, %s77
      %p81 = scmp.eq.s32.totalorder %s20, 0
      %p82 = por %p80, %p81
      %p83 = scmp.ne.s32.totalorder %s75, %s77
      %p84 = scmp.eq.s32.totalorder %s25, 1
      %p85 = por %p83, %p84
      %p86 = scmp.ne.s32.totalorder %s77, %s78
      %p87 = scmp.eq.s32.totalorder %s25, 0
      %p88 = por %p86, %p87
      %p89 = scmp.ne.s32.totalorder %s77, %s78
      %p90 = scmp.eq.s32.totalorder %s26, 1
      %p91 = por %p89, %p90
      %p93 = scmp.ne.s32.totalorder %s78, %s92
      %p94 = scmp.eq.s32.totalorder %s26, 0
      %p95 = por %p93, %p94
      %s97 = sadd.s32 %s96, 1
      %p100 = scmp.eq.s32.totalorder %s20, 1
      %p101 = scmp.ne.s32.totalorder %s96, %s98
      %p102 = scmp.eq.s32.totalorder %s20, 0
      %p103 = por %p101, %p102
      %p104 = scmp.ne.s32.totalorder %s96, %s98
      %p105 = scmp.eq.s32.totalorder %s25, 1
      %p106 = por %p104, %p105
      %p107 = scmp.ne.s32.totalorder %s98, %s99
      %p108 = scmp.eq.s32.totalorder %s25, 0
      %p109 = por %p107, %p108
      %p110 = scmp.ne.s32.totalorder %s98, %s99
      %p111 = scmp.eq.s32.totalorder %s26, 1
      %p112 = por %p110, %p111
      %p114 = scmp.ne.s32.totalorder %s99, %s113
      %p115 = scmp.eq.s32.totalorder %s26, 0
      %p116 = por %p114, %p115
      %s118 = sadd.s32 %s117, 1
      %p121 = scmp.eq.s32.totalorder %s20, 1
      %p122 = scmp.ne.s32.totalorder %s117, %s119
      %p123 = scmp.eq.s32.totalorder %s20, 0
      %p124 = por %p122, %p123
      %p125 = scmp.ne.s32.totalorder %s117, %s119
      %p126 = scmp.eq.s32.totalorder %s25, 1
      %p127 = por %p125, %p126
      %p128 = scmp.ne.s32.totalorder %s119, %s120
      %p129 = scmp.eq.s32.totalorder %s25, 0
      %p130 = por %p128, %p129
      %p131 = scmp.ne.s32.totalorder %s119, %s120
      %p132 = scmp.eq.s32.totalorder %s26, 1
      %p133 = por %p131, %p132
      %p135 = scmp.ne.s32.totalorder %s120, %s134
      %p136 = scmp.eq.s32.totalorder %s26, 0
      %p137 = por %p135, %p136
      %s139 = sadd.s32 %s138, 1
      %p142 = scmp.eq.s32.totalorder %s20, 1
      %p143 = scmp.ne.s32.totalorder %s138, %s140
      %p144 = scmp.eq.s32.totalorder %s20, 0
      %p145 = por %p143, %p144
      %p146 = scmp.ne.s32.totalorder %s138, %s140
      %p147 = scmp.eq.s32.totalorder %s25, 1
      %p148 = por %p146, %p147
      %p149 = scmp.ne.s32.totalorder %s140, %s141
      %p150 = scmp.eq.s32.totalorder %s25, 0
      %p151 = por %p149, %p150
      %p152 = scmp.ne.s32.totalorder %s140, %s141
      %p153 = scmp.eq.s32.totalorder %s26, 1
      %p154 = por %p152, %p153
      %p156 = scmp.ne.s32.totalorder %s141, %s155
      %p157 = scmp.eq.s32.totalorder %s26, 0
      %p158 = por %p156, %p157
      %s160 = sadd.s32 %s159, 1
      %p163 = scmp.eq.s32.totalorder %s20, 1
      %p164 = scmp.ne.s32.totalorder %s159, %s161
      %p165 = scmp.eq.s32.totalorder %s20, 0
      %p166 = por %p164, %p165
      %p167 = scmp.ne.s32.totalorder %s159, %s161
      %p168 = scmp.eq.s32.totalorder %s25, 1
      %p169 = por %p167, %p168
      %p170 = scmp.ne.s32.totalorder %s161, %s162
      %p171 = scmp.eq.s32.totalorder %s25, 0
      %p172 = por %p170, %p171
      %p173 = scmp.ne.s32.totalorder %s161, %s162
      %p174 = scmp.eq.s32.totalorder %s26, 1
      %p175 = por %p173, %p174
      %p177 = scmp.ne.s32.totalorder %s162, %s176
      %p178 = scmp.eq.s32.totalorder %s26, 0
      %p179 = por %p177, %p178
      %s181 = sadd.s32 %s180, 1
      %p184 = scmp.eq.s32.totalorder %s20, 1
      %p185 = scmp.ne.s32.totalorder %s180, %s182
      %p186 = scmp.eq.s32.totalorder %s20, 0
      %p187 = por %p185, %p186
      %p188 = scmp.ne.s32.totalorder %s180, %s182
      %p189 = scmp.eq.s32.totalorder %s25, 1
      %p190 = por %p188, %p189
      %p191 = scmp.ne.s32.totalorder %s182, %s183
      %p192 = scmp.eq.s32.totalorder %s25, 0
      %p193 = por %p191, %p192
      %p194 = scmp.ne.s32.totalorder %s182, %s183
      %p195 = scmp.eq.s32.totalorder %s26, 1
      %p196 = por %p194, %p195
      %p198 = scmp.ne.s32.totalorder %s183, %s197
      %p199 = scmp.eq.s32.totalorder %s26, 0
      %p200 = por %p198, %p199
      %s202 = sadd.s32 %s201, 1
      %p205 = scmp.eq.s32.totalorder %s20, 1
      %p206 = scmp.ne.s32.totalorder %s201, %s203
      %p207 = scmp.eq.s32.totalorder %s20, 0
      %p208 = por %p206, %p207
      %p209 = scmp.ne.s32.totalorder %s201, %s203
      %p210 = scmp.eq.s32.totalorder %s25, 1
      %p211 = por %p209, %p210
      %p212 = scmp.ne.s32.totalorder %s203, %s204
      %p213 = scmp.eq.s32.totalorder %s25, 0
      %p214 = por %p212, %p213
      %p215 = scmp.ne.s32.totalorder %s203, %s204
      %p216 = scmp.eq.s32.totalorder %s26, 1
      %p217 = por %p215, %p216
      %p219 = scmp.ne.s32.totalorder %s204, %s218
      %p220 = scmp.eq.s32.totalorder %s26, 0
      %p221 = por %p219, %p220
      %s223 = sadd.s32 %s222, 1
      %p226 = scmp.eq.s32.totalorder %s20, 1
      %p227 = scmp.ne.s32.totalorder %s222, %s224
      %p228 = scmp.eq.s32.totalorder %s20, 0
      %p229 = por %p227, %p228
      %p230 = scmp.ne.s32.totalorder %s222, %s224
      %p231 = scmp.eq.s32.totalorder %s25, 1
      %p232 = por %p230, %p231
      %p233 = scmp.ne.s32.totalorder %s224, %s225
      %p234 = scmp.eq.s32.totalorder %s25, 0
      %p235 = por %p233, %p234
      %p236 = scmp.ne.s32.totalorder %s224, %s225
      %p237 = scmp.eq.s32.totalorder %s26, 1
      %p238 = por %p236, %p237
      %p240 = scmp.ne.s32.totalorder %s225, %s239
      %p241 = scmp.eq.s32.totalorder %s26, 0
      %p242 = por %p240, %p241
      %s244 = sadd.s32 %s243, 1
      %p247 = scmp.eq.s32.totalorder %s20, 1
      %p248 = scmp.ne.s32.totalorder %s243, %s245
      %p249 = scmp.eq.s32.totalorder %s20, 0
      %p250 = por %p248, %p249
      %p251 = scmp.ne.s32.totalorder %s243, %s245
      %p252 = scmp.eq.s32.totalorder %s25, 1
      %p253 = por %p251, %p252
      %p254 = scmp.ne.s32.totalorder %s245, %s246
      %p255 = scmp.eq.s32.totalorder %s25, 0
      %p256 = por %p254, %p255
      %p257 = scmp.ne.s32.totalorder %s245, %s246
      %p258 = scmp.eq.s32.totalorder %s26, 1
      %p259 = por %p257, %p258
      %p261 = scmp.ne.s32.totalorder %s246, %s260
      %p262 = scmp.eq.s32.totalorder %s26, 0
      %p263 = por %p261, %p262
      %s264 = ssub.s32 %s20, %s27
      %p265 = scmp.eq.s32.totalorder %s264, 0
      %s267 = sadd.s32 %s266, 1
      %s268 = scalar_select %p265, %s266, %s267
      %p271 = pneg %p265
      %p272 = scmp.eq.s32.totalorder %s20, 1
      %p273 = por %p271, %p272
      %p274 = scmp.ne.s32.totalorder %s266, %s269
      %p275 = scmp.eq.s32.totalorder %s20, 0
      %p276 = por %p274, %p275
      %p277 = scmp.ne.s32.totalorder %s266, %s269
      %p278 = scmp.eq.s32.totalorder %s25, 1
      %p279 = por %p277, %p278
      %p280 = scmp.ne.s32.totalorder %s269, %s270
      %p281 = scmp.eq.s32.totalorder %s25, 0
      %p282 = por %p280, %p281
      %p283 = scmp.ne.s32.totalorder %s269, %s270
      %p284 = scmp.eq.s32.totalorder %s26, 1
      %p285 = por %p283, %p284
      %p287 = scmp.ne.s32.totalorder %s270, %s286
      %p288 = scmp.eq.s32.totalorder %s26, 0
      %p289 = por %p287, %p288
      %p290 = scmp.le.s32.totalorder 1, %s20
      %p291 = scmp.lt.s32.totalorder %s20, 3
      %p292 = pnand %p290, %p291
      %p293 = pneg %p292
      // Predicated region
      $region9: #{mesh_conv_encoder_forward.1} parent=5 // pred_check
        _
      $region10: #{mesh_conv_encoder_forward.1} parent=5 // pred_check_branch
        %295 = sbr.rel (%p292) target = $region12
      $region11: #{mesh_conv_encoder_forward.1} parent=5 // pred_region
        %s296 = ssub.s32 %s20, 1
        // Predicated region
        $region13: #{mesh_conv_encoder_forward.1} parent=11 // pred_check
          %p297 = pneg %p67
        $region14: #{mesh_conv_encoder_forward.1} parent=11 // pred_check_branch
          %299 = sbr.rel (%p297) target = $region16
        $region15: #{mesh_conv_encoder_forward.1} parent=11 // pred_region
          _
        $region16: #{mesh_conv_encoder_forward.1} parent=11 // pred_fallthru
          _
        // Predicated region
        $region17: #{mesh_conv_encoder_forward.1} parent=11 // pred_check
          %p300 = pneg %p88
        $region18: #{mesh_conv_encoder_forward.1} parent=11 // pred_check_branch
          %302 = sbr.rel (%p300) target = $region20
        $region19: #{mesh_conv_encoder_forward.1} parent=11 // pred_region
          _
        $region20: #{mesh_conv_encoder_forward.1} parent=11 // pred_fallthru
          _
        // Predicated region
        $region21: #{mesh_conv_encoder_forward.1} parent=11 // pred_check
          %p303 = pneg %p109
        $region22: #{mesh_conv_encoder_forward.1} parent=11 // pred_check_branch
          %305 = sbr.rel (%p303) target = $region24
        $region23: #{mesh_conv_encoder_forward.1} parent=11 // pred_region
          _
        $region24: #{mesh_conv_encoder_forward.1} parent=11 // pred_fallthru
          _
        // Predicated region
        $region25: #{mesh_conv_encoder_forward.1} parent=11 // pred_check
          %p306 = pneg %p130
        $region26: #{mesh_conv_encoder_forward.1} parent=11 // pred_check_branch
          %308 = sbr.rel (%p306) target = $region28
        $region27: #{mesh_conv_encoder_forward.1} parent=11 // pred_region
          _
        $region28: #{mesh_conv_encoder_forward.1} parent=11 // pred_fallthru
          _
        // Predicated region
        $region29: #{mesh_conv_encoder_forward.1} parent=11 // pred_check
          %p309 = pneg %p151
        $region30: #{mesh_conv_encoder_forward.1} parent=11 // pred_check_branch
          %311 = sbr.rel (%p309) target = $region32
        $region31: #{mesh_conv_encoder_forward.1} parent=11 // pred_region
          _
        $region32: #{mesh_conv_encoder_forward.1} parent=11 // pred_fallthru
          _
        // Predicated region
        $region33: #{mesh_conv_encoder_forward.1} parent=11 // pred_check
          %p312 = pneg %p172
        $region34: #{mesh_conv_encoder_forward.1} parent=11 // pred_check_branch
          %314 = sbr.rel (%p312) target = $region36
        $region35: #{mesh_conv_encoder_forward.1} parent=11 // pred_region
          _
        $region36: #{mesh_conv_encoder_forward.1} parent=11 // pred_fallthru
          _
        // Predicated region
        $region37: #{mesh_conv_encoder_forward.1} parent=11 // pred_check
          %p315 = pneg %p193
        $region38: #{mesh_conv_encoder_forward.1} parent=11 // pred_check_branch
          %317 = sbr.rel (%p315) target = $region40
        $region39: #{mesh_conv_encoder_forward.1} parent=11 // pred_region
          _
        $region40: #{mesh_conv_encoder_forward.1} parent=11 // pred_fallthru
          _
        // Predicated region
        $region41: #{mesh_conv_encoder_forward.1} parent=11 // pred_check
          %p318 = pneg %p214
        $region42: #{mesh_conv_encoder_forward.1} parent=11 // pred_check_branch
          %320 = sbr.rel (%p318) target = $region44
        $region43: #{mesh_conv_encoder_forward.1} parent=11 // pred_region
          _
        $region44: #{mesh_conv_encoder_forward.1} parent=11 // pred_fallthru
          _
        // Predicated region
        $region45: #{mesh_conv_encoder_forward.1} parent=11 // pred_check
          %p321 = pneg %p235
        $region46: #{mesh_conv_encoder_forward.1} parent=11 // pred_check_branch
          %323 = sbr.rel (%p321) target = $region48
        $region47: #{mesh_conv_encoder_forward.1} parent=11 // pred_region
          _
        $region48: #{mesh_conv_encoder_forward.1} parent=11 // pred_fallthru
          _
        // Predicated region
        $region49: #{mesh_conv_encoder_forward.1} parent=11 // pred_check
          %p324 = pneg %p256
        $region50: #{mesh_conv_encoder_forward.1} parent=11 // pred_check_branch
          %326 = sbr.rel (%p324) target = $region52
        $region51: #{mesh_conv_encoder_forward.1} parent=11 // pred_region
          _
        $region52: #{mesh_conv_encoder_forward.1} parent=11 // pred_fallthru
          _
      $region12: #{mesh_conv_encoder_forward.1} parent=5 // pred_fallthru
        _
      %p327 = scmp.lt.s32.totalorder %s20, 2
      // Predicated region
      $region53: #{mesh_conv_encoder_forward.1} parent=5 // pred_check
        %p328 = pneg %p327
      $region54: #{mesh_conv_encoder_forward.1} parent=5 // pred_check_branch
        %330 = sbr.rel (%p328) target = $region56
      $region55: #{mesh_conv_encoder_forward.1} parent=5 // pred_region
        // Predicated region
        $region57: #{mesh_conv_encoder_forward.1} parent=55 // pred_check
          %p331 = pneg %p40
        $region58: #{mesh_conv_encoder_forward.1} parent=55 // pred_check_branch
          %333 = sbr.rel (%p331) target = $region60
        $region59: #{mesh_conv_encoder_forward.1} parent=55 // pred_region
          %p334 = scmp.lt.s32.totalorder %s20, 1
          %s335 = scalar_select %p334, %s20, 1
          %s336 = smul.addr %s335, 8
          %s337 = smul.addr %s336, 8
          %s338 = scalar_lea.vmem %s0, %s337
        $region60: #{mesh_conv_encoder_forward.1} parent=55 // pred_fallthru
          _
      $region56: #{mesh_conv_encoder_forward.1} parent=5 // pred_fallthru
        _
      %p339 = scmp.le.s32.totalorder 1, %s20
      %p340 = scmp.lt.s32.totalorder %s20, 3
      %p341 = pnand %p339, %p340
      %p342 = pneg %p341
      // Predicated region
      $region61: #{mesh_conv_encoder_forward.1} parent=5 // pred_check
        _
      $region62: #{mesh_conv_encoder_forward.1} parent=5 // pred_check_branch
        %344 = sbr.rel (%p341) target = $region64
      $region63: #{mesh_conv_encoder_forward.1} parent=5 // pred_region
        %s345 = ssub.s32 %s20, 1
        %p346 = scmp.lt.s32.totalorder %s25, 1
        %s347 = scalar_select %p346, %s25, 1
        %s348 = smul.addr %s347, 8
        %s349 = smul.addr %s348, 8
        %s350 = scalar_lea.vmem %s0, %s349
        %p351 = pneg %p46
        %p352 = pneg %p43
        %p353 = pneg %p67
        %p354 = pneg %p64
        %p355 = pneg %p88
        %p356 = pneg %p85
        %p357 = pneg %p109
        %p358 = pneg %p106
        %p359 = pneg %p130
        %p360 = pneg %p127
        %p361 = pneg %p151
        %p362 = pneg %p148
        %p363 = pneg %p172
        %p364 = pneg %p169
        %p365 = pneg %p193
        %p366 = pneg %p190
        %p367 = pneg %p214
        %p368 = pneg %p211
        %p369 = pneg %p235
        %p370 = pneg %p232
        %p371 = pneg %p256
        %p372 = pneg %p253
        %p373 = pneg %p282
        %p374 = pneg %p279
        %s375 = sand.u32 %s269, 1
        %s376 = scalar_lea.sflag [#allocation3], %s375
        %s377 = sand.u32 %s269, 1
        %s378 = scalar_lea.vmem [#allocation2], %s377
        %p379 = scmp.lt.s32.totalorder %s25, 1
        %s380 = scalar_select %p379, %s25, 1
        %s381 = smul.addr %s380, 8
        %s382 = smul.addr %s381, 8
        %s383 = scalar_lea.vmem %s0, %s382
        %v385 = vld [vmem:[%s383] sm:$0xff]
        %v386 = vld [vmem:[%s383 + $0x8] sm:$0xff]
        %v387 = vld [vmem:[%s383 + $0x10] sm:$0xff]
        %v388 = vld [vmem:[%s383 + $0x18] sm:$0xff]
        %v389 = vld [vmem:[%s383 + $0x20] sm:$0xff]
        %v390 = vld [vmem:[%s383 + $0x28] sm:$0xff]
        %v391 = vld [vmem:[%s383 + $0x30] sm:$0xff]
        %v392 = vld [vmem:[%s383 + $0x38] sm:$0xff]
        %v393 = vld [vmem:[%s1] sm:$0xf]
        %v394 = vld [vmem:[%s1 + $0x4] sm:$0x3]
        %v395 = vld [vmem:[%s2] sm:$0x1]
        %v396 = vpack.c.bf16 %v386, %v385
        %v397 = vpack.c.bf16 %v388, %v387
        %v398 = vpack.c.bf16 %v390, %v389
        %v399 = vpack.c.bf16 %v392, %v391
        %vm400 = vsmask.f32 7424
        %v402 = vshrl.u32 %v396, 16
        %v404 = vshll.u32 %v396, 16
        %v406 = vrot.slane %v404, 1
        %v407 = vor.u32 %v402, %v406
        %v409 = vshll.u32 %v397, 16
        %v411 = vrot.slane %v409, 1
        %v412 = vsel %vm400, %v407, %v411
        %v413 = vshrl.u32 %v397, 16
        %v415 = vor.u32 %v413, %v411
        %v417 = vshll.u32 %v398, 16
        %v419 = vrot.slane %v417, 1
        %v420 = vsel %vm400, %v415, %v419
        %v421 = vshrl.u32 %v398, 16
        %v423 = vor.u32 %v421, %v419
        %v425 = vshll.u32 %v399, 16
        %v427 = vrot.slane %v425, 1
        %v428 = vsel %vm400, %v423, %v427
        %v429 = vshrl.u32 %v399, 16
        %v431 = vor.u32 %v429, %v427
        %vm434 = vcmask 1047552
        %vm435 = vmand %vm434, %vm400
        %v436 = vsel %vm435, %v431, %v406
        %vm441 = vcmask 1046528
        %v442 = vrot.slane %v396, 1
        %v443 = vrot.slane %v397, 1
        %v444 = vsel %vm441, %v442, %v443
        %v445 = vrot.slane %v398, 1
        %v446 = vsel %vm441, %v443, %v445
        %v447 = vrot.slane %v399, 1
        %v448 = vsel %vm441, %v445, %v447
        %vm449 = vcmask 1046528
        %v452 = vsel %vm449, %v447, %v442
        %vm453 = vsmask.f32 6400
        %v454 = vrot.slane %v402, 1
        %v455 = vrot.slane %v404, 2
        %v456 = vor.u32 %v454, %v455
        %v457 = vrot.slane %v413, 1
        %v458 = vrot.slane %v409, 2
        %v459 = vor.u32 %v457, %v458
        %v460 = vsel %vm453, %v456, %v459
        %v461 = vrot.slane %v421, 1
        %v462 = vrot.slane %v417, 2
        %v463 = vor.u32 %v461, %v462
        %v464 = vsel %vm453, %v459, %v463
        %v465 = vrot.slane %v429, 1
        %v466 = vrot.slane %v425, 2
        %v467 = vor.u32 %v465, %v466
        %v468 = vsel %vm453, %v463, %v467
        %vm471 = vmand %vm441, %vm453
        %v472 = vsel %vm471, %v467, %v456
        %474 = vrot.lane.b32.xlu0 %v412, 3
        %v475 = vpop.permute.xlu0 %474
        %476 = vrot.lane.b32.xlu0 %v420, 3
        %v477 = vpop.permute.xlu0 %476
        %478 = vrot.lane.b32.xlu0 %v428, 3
        %v479 = vpop.permute.xlu0 %478
        %480 = vrot.lane.b32.xlu0 %v436, 3
        %v481 = vpop.permute.xlu0 %480
        %483 = vrot.lane.b32.xlu0 %v444, 6
        %v484 = vpop.permute.xlu0 %483
        %485 = vrot.lane.b32.xlu0 %v446, 6
        %v486 = vpop.permute.xlu0 %485
        %487 = vrot.lane.b32.xlu0 %v448, 6
        %v488 = vpop.permute.xlu0 %487
        %489 = vrot.lane.b32.xlu0 %v452, 6
        %v490 = vpop.permute.xlu0 %489
        %492 = vrot.lane.b32.xlu0 %v460, 9
        %v493 = vpop.permute.xlu0 %492
        %494 = vrot.lane.b32.xlu0 %v464, 9
        %v495 = vpop.permute.xlu0 %494
        %496 = vrot.lane.b32.xlu0 %v468, 9
        %v497 = vpop.permute.xlu0 %496
        %498 = vrot.lane.b32.xlu0 %v472, 9
        %v499 = vpop.permute.xlu0 %498
        %vm500 = vcmask 23552
        %v502 = vsel %vm500, %v396, %v475
        %v504 = vsel %vm500, %v397, %v477
        %v506 = vsel %vm500, %v398, %v479
        %v508 = vsel %vm500, %v399, %v481
        %vm509 = vcmask 48128
        %v511 = vsel %vm509, %v502, %v484
        %v513 = vsel %vm509, %v504, %v486
        %v515 = vsel %vm509, %v506, %v488
        %v517 = vsel %vm509, %v508, %v490
        %vm518 = vcmask 72704
        %v520 = vsel %vm518, %v511, %v493
        %v522 = vsel %vm518, %v513, %v495
        %v524 = vsel %vm518, %v515, %v497
        %v526 = vsel %vm518, %v517, %v499
        %v528 = vlaneseq
        %v529 = vshrl.u32 %v528, 7
        %v530 = vsub.s32 0, %v529
        %v531 = vrot.slane %v395, %v530
        %v535 = vunpack.c.l.b16 %v393
        %v536 = vunpack.c.l.b16 %v394
        %v537 = vpack.c.b16 %v536, %v535
        %vm538 = vcmask 97280
        %v539 = vsel %vm538, %v520, 0
        %v541 = vsel %vm538, %v522, 0
        %v543 = vsel %vm538, %v524, 0
        %v545 = vsel %vm538, %v526, 0
        %vm547 = vcmask 1045504
        %v549 = vsel %vm547, %v537, 0
        %551 = vmatprep.subr.bf16.mxu0 0
        %552 = vmatpush1.bf16.msra.mxu0 0
        %553 = vmatprep.subr.bf16.mxu0 0
        %554 = vmatpush1.bf16.msra.mxu0 0
        %555 = vmatprep.subr.bf16.mxu0 0
        %556 = vmatpush1.bf16.msra.mxu0 0
        %557 = vmatprep.subr.bf16.mxu0 0
        %558 = vmatpush1.bf16.msra.mxu0 0
        %559 = vmatprep.subr.bf16.mxu0 0
        %560 = vmatpush1.bf16.msra.mxu0 0
        %561 = vmatprep.subr.bf16.mxu0 0
        %562 = vmatpush1.bf16.msra.mxu0 0
        %563 = vmatprep.subr.bf16.mxu0 0
        %564 = vmatpush1.bf16.msra.mxu0 0
        %565 = vmatprep.subr.bf16.mxu0 0
        %566 = vmatpush1.bf16.msra.mxu0 %v549
        %567 = vmatprep.subr.bf16.mxu0 0
        %568 = vmatpush2.bf16.msra.mxu0 0
        %569 = vmatprep.subr.bf16.mxu0 0
        %570 = vmatpush2.bf16.msra.mxu0 0
        %571 = vmatprep.subr.bf16.mxu0 0
        %572 = vmatpush2.bf16.msra.mxu0 0
        %573 = vmatprep.subr.bf16.mxu0 0
        %574 = vmatpush2.bf16.msra.mxu0 0
        %575 = vmatprep.subr.bf16.mxu0 0
        %576 = vmatpush2.bf16.msra.mxu0 0
        %577 = vmatprep.subr.bf16.mxu0 0
        %578 = vmatpush2.bf16.msra.mxu0 0
        %579 = vmatprep.subr.bf16.mxu0 0
        %580 = vmatpush2.bf16.msra.mxu0 0
        %581 = vmatprep.subr.bf16.mxu0 0
        %582 = vmatpush2.bf16.msra.mxu0 0
        %583 = vmatprep.mubr.bf16.mxu0 0
        %584 = vmatmul.mubr.bf16.gmra.mxu0 %v539
        %v585 = vpop.f32.mrf.mxu0
        %v586 = vadd.f32 %v531, %v585
        %v587 = vpop.f32.mrf.mxu0
        %v588 = vpop.f32.mrf.mxu0
        %v589 = vadd.f32 %v531, %v588
        %v590 = vpop.f32.mrf.mxu0
        %591 = vmatprep.mubr.bf16.mxu0 0
        %592 = vmatmul.mubr.bf16.gmra.mxu0 %v541
        %v593 = vpop.f32.mrf.mxu0
        %v594 = vadd.f32 %v531, %v593
        %v595 = vpop.f32.mrf.mxu0
        %v596 = vpop.f32.mrf.mxu0
        %v597 = vadd.f32 %v531, %v596
        %v598 = vpop.f32.mrf.mxu0
        %599 = vmatprep.mubr.bf16.mxu0 0
        %600 = vmatmul.mubr.bf16.gmra.mxu0 %v543
        %v601 = vpop.f32.mrf.mxu0
        %v602 = vadd.f32 %v531, %v601
        %v603 = vpop.f32.mrf.mxu0
        %v604 = vpop.f32.mrf.mxu0
        %v605 = vadd.f32 %v531, %v604
        %v606 = vpop.f32.mrf.mxu0
        %607 = vmatprep.mubr.bf16.mxu0 0
        %608 = vmatmul.mubr.bf16.gmra.mxu0 %v545
        %v609 = vpop.f32.mrf.mxu0
        %v610 = vadd.f32 %v531, %v609
        %v611 = vpop.f32.mrf.mxu0
        %v612 = vpop.f32.mrf.mxu0
        %v613 = vadd.f32 %v531, %v612
        %v614 = vpop.f32.mrf.mxu0
        %615 = vdwg.mxu0
        %v616 = vmax.f32 %v586, 0.0
        %v617 = vmax.f32 %v589, 0.0
        %v618 = vmax.f32 %v594, 0.0
        %v619 = vmax.f32 %v597, 0.0
        %v620 = vmax.f32 %v602, 0.0
        %v621 = vmax.f32 %v605, 0.0
        %v622 = vmax.f32 %v610, 0.0
        %v623 = vmax.f32 %v613, 0.0
        %v624 = vlaneseq
        %v625 = vshrl.u32 %v624, 7
        %v626 = vadd.s32 %v625, 8
        %v627 = vadd.s32 %v625, 16
        %v628 = vadd.s32 %v625, 24
        %v629 = vlaneseq
        %v630 = vand.u32 %v629, 127
        %v631 = vmul.u32 %v625, 2
        %v632 = vmul.u32 %v626, 2
        %v633 = vmul.u32 %v627, 2
        %v634 = vmul.u32 %v628, 2
        %vm635 = vcmp.eq.s32.totalorder %v630, %v631
        %vm636 = vcmp.eq.s32.totalorder %v630, %v632
        %vm637 = vcmp.eq.s32.totalorder %v630, %v633
        %vm638 = vcmp.eq.s32.totalorder %v630, %v634
        %v639 = vadd.s32 %v631, 1
        %v640 = vadd.s32 %v632, 1
        %v641 = vadd.s32 %v633, 1
        %v642 = vadd.s32 %v634, 1
        %vm643 = vcmp.eq.s32.totalorder %v630, %v639
        %vm644 = vcmp.eq.s32.totalorder %v630, %v640
        %vm645 = vcmp.eq.s32.totalorder %v630, %v641
        %vm646 = vcmp.eq.s32.totalorder %v630, %v642
        %vm647 = vmor %vm635, %vm643
        %vm648 = vmor %vm636, %vm644
        %vm649 = vmor %vm637, %vm645
        %vm650 = vmor %vm638, %vm646
        %v651 = vsel %vm647, 0.5, 0.0
        %v652 = vsel %vm648, 0.5, 0.0
        %v653 = vsel %vm649, 0.5, 0.0
        %v654 = vsel %vm650, 0.5, 0.0
        %vm655 = vcmask 523264
        %v657 = vsel %vm655, %v651, 0
        %v660 = vsel %vm655, %v652, 0
        %v663 = vsel %vm655, %v653, 0
        %v666 = vsel %vm655, %v654, 0
        %668 = vmatprep.subr.mxu0 0.0
        %669 = vmatpush1.msra.mxu0 0.0
        %670 = vmatprep.subr.mxu0 0.0
        %671 = vmatpush1.msra.mxu0 0.0
        %672 = vmatprep.subr.mxu0 0.0
        %673 = vmatpush1.msra.mxu0 0.0
        %674 = vmatprep.subr.mxu0 0.0
        %675 = vmatpush1.msra.mxu0 0.0
        %676 = vmatprep.subr.mxu0 0.0
        %677 = vmatpush1.msra.mxu0 0.0
        %678 = vmatprep.subr.mxu0 0.0
        %679 = vmatpush1.msra.mxu0 0.0
        %680 = vmatprep.subr.mxu0 0.0
        %681 = vmatpush1.msra.mxu0 0.0
        %682 = vmatprep.subr.mxu0 0.0
        %683 = vmatpush1.msra.mxu0 0.0
        %684 = vmatprep.subr.mxu0 0.0
        %685 = vmatpush1.msra.mxu0 %v623
        %686 = vmatprep.subr.mxu0 0.0
        %687 = vmatpush1.msra.mxu0 %v622
        %688 = vmatprep.subr.mxu0 0.0
        %689 = vmatpush1.msra.mxu0 %v621
        %690 = vmatprep.subr.mxu0 0.0
        %691 = vmatpush1.msra.mxu0 %v620
        %692 = vmatprep.subr.mxu0 0.0
        %693 = vmatpush1.msra.mxu0 %v619
        %694 = vmatprep.subr.mxu0 0.0
        %695 = vmatpush1.msra.mxu0 %v618
        %696 = vmatprep.subr.mxu0 0.0
        %697 = vmatpush1.msra.mxu0 %v617
        %698 = vmatprep.subr.mxu0 0.0
        %699 = vmatpush1.msra.mxu0 %v616
        %700 = vmatprep.subr.mxu0 0.0
        %701 = vmatpush2.msra.mxu0 0.0
        %702 = vmatprep.subr.mxu0 0.0
        %703 = vmatpush2.msra.mxu0 0.0
        %704 = vmatprep.subr.mxu0 0.0
        %705 = vmatpush2.msra.mxu0 0.0
        %706 = vmatprep.subr.mxu0 0.0
        %707 = vmatpush2.msra.mxu0 0.0
        %708 = vmatprep.subr.mxu0 0.0
        %709 = vmatpush2.msra.mxu0 0.0
        %710 = vmatprep.subr.mxu0 0.0
        %711 = vmatpush2.msra.mxu0 0.0
        %712 = vmatprep.subr.mxu0 0.0
        %713 = vmatpush2.msra.mxu0 0.0
        %714 = vmatprep.subr.mxu0 0.0
        %715 = vmatpush2.msra.mxu0 0.0
        %716 = vmatprep.subr.mxu0 0.0
        %717 = vmatpush2.msra.mxu0 0.0
        %718 = vmatprep.subr.mxu0 0.0
        %719 = vmatpush2.msra.mxu0 0.0
        %720 = vmatprep.subr.mxu0 0.0
        %721 = vmatpush2.msra.mxu0 0.0
        %722 = vmatprep.subr.mxu0 0.0
        %723 = vmatpush2.msra.mxu0 0.0
        %724 = vmatprep.subr.mxu0 0.0
        %725 = vmatpush2.msra.mxu0 0.0
        %726 = vmatprep.subr.mxu0 0.0
        %727 = vmatpush2.msra.mxu0 0.0
        %728 = vmatprep.subr.mxu0 0.0
        %729 = vmatpush2.msra.mxu0 0.0
        %730 = vmatprep.subr.mxu0 0.0
        %731 = vmatpush2.msra.mxu0 0.0
        %732 = vmatprep.mubr.f32.mxu0 0.0
        %733 = vmatmul.mubr.f32.gmra.mxu0 %v657
        %v734 = vpop.f32.mrf.mxu0
        %v735 = vadd.f32 0.0, %v734
        %v736 = vpop.f32.mrf.mxu0
        %737 = vmatprep.mubr.f32.mxu0 0.0
        %738 = vmatmul.mubr.f32.gmra.mxu0 %v660
        %v739 = vpop.f32.mrf.mxu0
        %v740 = vadd.f32 0.0, %v739
        %v741 = vpop.f32.mrf.mxu0
        %742 = vmatprep.mubr.f32.mxu0 0.0
        %743 = vmatmul.mubr.f32.gmra.mxu0 %v663
        %v744 = vpop.f32.mrf.mxu0
        %v745 = vadd.f32 0.0, %v744
        %v746 = vpop.f32.mrf.mxu0
        %747 = vmatprep.mubr.f32.mxu0 0.0
        %748 = vmatmul.mubr.f32.gmra.mxu0 %v666
        %v749 = vpop.f32.mrf.mxu0
        %v750 = vadd.f32 0.0, %v749
        %v751 = vpop.f32.mrf.mxu0
        %752 = vdwg.mxu0
        %v753 = vld [vmem:[%s3] sm:$0xf]
        %v754 = vld [vmem:[%s3 + $0x4] sm:$0xf]
        %v755 = vld [vmem:[%s3 + $0x8] sm:$0xf]
        %v756 = vld [vmem:[%s3 + $0xc] sm:$0xf]
        %v757 = vld [vmem:[%s3 + $0x10] sm:$0xf]
        %v758 = vld [vmem:[%s3 + $0x14] sm:$0xf]
        %v759 = vld [vmem:[%s3 + $0x18] sm:$0xf]
        %v760 = vld [vmem:[%s3 + $0x1c] sm:$0xf]
        %v761 = vld [vmem:[%s4] sm:$0x1]
        %v762 = vpack.c.bf16 %v740, %v735
        %v763 = vpack.c.bf16 %v750, %v745
        %v765 = vshrl.u32 %v762, 16
        %v767 = vshll.u32 %v762, 16
        %v769 = vrot.slane %v767, 1
        %v770 = vor.u32 %v765, %v769
        %v772 = vshll.u32 %v763, 16
        %v774 = vrot.slane %v772, 1
        %v775 = vsel %vm400, %v770, %v774
        %v776 = vshrl.u32 %v763, 16
        %v778 = vor.u32 %v776, %v774
        %v781 = vsel %vm435, %v778, %v769
        %v784 = vrot.slane %v762, 1
        %v785 = vrot.slane %v763, 1
        %v786 = vsel %vm441, %v784, %v785
        %v789 = vsel %vm449, %v785, %v784
        %v790 = vrot.slane %v765, 1
        %v791 = vrot.slane %v767, 2
        %v792 = vor.u32 %v790, %v791
        %v793 = vrot.slane %v776, 1
        %v794 = vrot.slane %v772, 2
        %v795 = vor.u32 %v793, %v794
        %v796 = vsel %vm453, %v792, %v795
        %v799 = vsel %vm471, %v795, %v792
        %801 = vrot.lane.b32.xlu0 %v775, 16
        %v802 = vpop.permute.xlu0 %801
        %803 = vrot.lane.b32.xlu0 %v781, 16
        %v804 = vpop.permute.xlu0 %803
        %806 = vrot.lane.b32.xlu0 %v786, 32
        %v807 = vpop.permute.xlu0 %806
        %808 = vrot.lane.b32.xlu0 %v789, 32
        %v809 = vpop.permute.xlu0 %808
        %811 = vrot.lane.b32.xlu0 %v796, 48
        %v812 = vpop.permute.xlu0 %811
        %813 = vrot.lane.b32.xlu0 %v799, 48
        %v814 = vpop.permute.xlu0 %813
        %vm815 = vcmask 130048
        %v817 = vsel %vm815, %v762, %v802
        %v819 = vsel %vm815, %v763, %v804
        %vm820 = vcmask 261120
        %v822 = vsel %vm820, %v817, %v807
        %v824 = vsel %vm820, %v819, %v809
        %vm825 = vcmask 392192
        %v827 = vsel %vm825, %v822, %v812
        %v829 = vsel %vm825, %v824, %v814
        %v831 = vlaneseq
        %v832 = vshrl.u32 %v831, 7
        %v833 = vsub.s32 0, %v832
        %v834 = vrot.slane %v761, %v833
        %v844 = vunpack.c.l.b16 %v753
        %v845 = vunpack.c.l.b16 %v754
        %v846 = vunpack.c.l.b16 %v755
        %v847 = vunpack.c.l.b16 %v756
        %v848 = vunpack.c.l.b16 %v757
        %v849 = vunpack.c.l.b16 %v758
        %v850 = vunpack.c.l.b16 %v759
        %v851 = vunpack.c.l.b16 %v760
        %v852 = vpack.c.b16 %v845, %v844
        %v853 = vpack.c.b16 %v847, %v846
        %v854 = vpack.c.b16 %v849, %v848
        %v855 = vpack.c.b16 %v851, %v850
        %v860 = vsel %vm655, %v827, 0
        %v862 = vsel %vm655, %v829, 0
        %864 = vmatprep.subr.bf16.mxu0 0
        %865 = vmatpush1.bf16.msra.mxu0 0
        %866 = vmatprep.subr.bf16.mxu0 0
        %867 = vmatpush1.bf16.msra.mxu0 0
        %868 = vmatprep.subr.bf16.mxu0 0
        %869 = vmatpush1.bf16.msra.mxu0 0
        %870 = vmatprep.subr.bf16.mxu0 0
        %871 = vmatpush1.bf16.msra.mxu0 0
        %872 = vmatprep.subr.bf16.mxu0 0
        %873 = vmatpush1.bf16.msra.mxu0 %v855
        %874 = vmatprep.subr.bf16.mxu0 0
        %875 = vmatpush1.bf16.msra.mxu0 %v854
        %876 = vmatprep.subr.bf16.mxu0 0
        %877 = vmatpush1.bf16.msra.mxu0 %v853
        %878 = vmatprep.subr.bf16.mxu0 0
        %879 = vmatpush1.bf16.msra.mxu0 %v852
        %880 = vmatprep.subr.bf16.mxu0 0
        %881 = vmatpush2.bf16.msra.mxu0 0
        %882 = vmatprep.subr.bf16.mxu0 0
        %883 = vmatpush2.bf16.msra.mxu0 0
        %884 = vmatprep.subr.bf16.mxu0 0
        %885 = vmatpush2.bf16.msra.mxu0 0
        %886 = vmatprep.subr.bf16.mxu0 0
        %887 = vmatpush2.bf16.msra.mxu0 0
        %888 = vmatprep.subr.bf16.mxu0 0
        %889 = vmatpush2.bf16.msra.mxu0 0
        %890 = vmatprep.subr.bf16.mxu0 0
        %891 = vmatpush2.bf16.msra.mxu0 0
        %892 = vmatprep.subr.bf16.mxu0 0
        %893 = vmatpush2.bf16.msra.mxu0 0
        %894 = vmatprep.subr.bf16.mxu0 0
        %895 = vmatpush2.bf16.msra.mxu0 0
        %896 = vmatprep.mubr.bf16.mxu0 0
        %897 = vmatmul.mubr.bf16.gmra.mxu0 %v860
        %v898 = vpop.f32.mrf.mxu0
        %v899 = vadd.f32 %v834, %v898
        %v900 = vpop.f32.mrf.mxu0
        %v901 = vpop.f32.mrf.mxu0
        %v902 = vadd.f32 %v834, %v901
        %v903 = vpop.f32.mrf.mxu0
        %904 = vmatprep.mubr.bf16.mxu0 0
        %905 = vmatmul.mubr.bf16.gmra.mxu0 %v862
        %v906 = vpop.f32.mrf.mxu0
        %v907 = vadd.f32 %v834, %v906
        %v908 = vpop.f32.mrf.mxu0
        %v909 = vpop.f32.mrf.mxu0
        %v910 = vadd.f32 %v834, %v909
        %v911 = vpop.f32.mrf.mxu0
        %912 = vdwg.mxu0
        %v913 = vmax.f32 %v899, 0.0
        %v914 = vmax.f32 %v902, 0.0
        %v915 = vmax.f32 %v907, 0.0
        %v916 = vmax.f32 %v910, 0.0
        %v917 = vsel %vm820, %v651, 0
        %v919 = vsel %vm820, %v652, 0
        %921 = vmatprep.subr.mxu0 0.0
        %922 = vmatpush1.msra.mxu0 0.0
        %923 = vmatprep.subr.mxu0 0.0
        %924 = vmatpush1.msra.mxu0 0.0
        %925 = vmatprep.subr.mxu0 0.0
        %926 = vmatpush1.msra.mxu0 0.0
        %927 = vmatprep.subr.mxu0 0.0
        %928 = vmatpush1.msra.mxu0 0.0
        %929 = vmatprep.subr.mxu0 0.0
        %930 = vmatpush1.msra.mxu0 0.0
        %931 = vmatprep.subr.mxu0 0.0
        %932 = vmatpush1.msra.mxu0 0.0
        %933 = vmatprep.subr.mxu0 0.0
        %934 = vmatpush1.msra.mxu0 0.0
        %935 = vmatprep.subr.mxu0 0.0
        %936 = vmatpush1.msra.mxu0 0.0
        %937 = vmatprep.subr.mxu0 0.0
        %938 = vmatpush1.msra.mxu0 0.0
        %939 = vmatprep.subr.mxu0 0.0
        %940 = vmatpush1.msra.mxu0 0.0
        %941 = vmatprep.subr.mxu0 0.0
        %942 = vmatpush1.msra.mxu0 0.0
        %943 = vmatprep.subr.mxu0 0.0
        %944 = vmatpush1.msra.mxu0 0.0
        %945 = vmatprep.subr.mxu0 0.0
        %946 = vmatpush1.msra.mxu0 %v916
        %947 = vmatprep.subr.mxu0 0.0
        %948 = vmatpush1.msra.mxu0 %v915
        %949 = vmatprep.subr.mxu0 0.0
        %950 = vmatpush1.msra.mxu0 %v914
        %951 = vmatprep.subr.mxu0 0.0
        %952 = vmatpush1.msra.mxu0 %v913
        %953 = vmatprep.subr.mxu0 0.0
        %954 = vmatpush2.msra.mxu0 0.0
        %955 = vmatprep.subr.mxu0 0.0
        %956 = vmatpush2.msra.mxu0 0.0
        %957 = vmatprep.subr.mxu0 0.0
        %958 = vmatpush2.msra.mxu0 0.0
        %959 = vmatprep.subr.mxu0 0.0
        %960 = vmatpush2.msra.mxu0 0.0
        %961 = vmatprep.subr.mxu0 0.0
        %962 = vmatpush2.msra.mxu0 0.0
        %963 = vmatprep.subr.mxu0 0.0
        %964 = vmatpush2.msra.mxu0 0.0
        %965 = vmatprep.subr.mxu0 0.0
        %966 = vmatpush2.msra.mxu0 0.0
        %967 = vmatprep.subr.mxu0 0.0
        %968 = vmatpush2.msra.mxu0 0.0
        %969 = vmatprep.subr.mxu0 0.0
        %970 = vmatpush2.msra.mxu0 0.0
        %971 = vmatprep.subr.mxu0 0.0
        %972 = vmatpush2.msra.mxu0 0.0
        %973 = vmatprep.subr.mxu0 0.0
        %974 = vmatpush2.msra.mxu0 0.0
        %975 = vmatprep.subr.mxu0 0.0
        %976 = vmatpush2.msra.mxu0 0.0
        %977 = vmatprep.subr.mxu0 0.0
        %978 = vmatpush2.msra.mxu0 0.0
        %979 = vmatprep.subr.mxu0 0.0
        %980 = vmatpush2.msra.mxu0 0.0
        %981 = vmatprep.subr.mxu0 0.0
        %982 = vmatpush2.msra.mxu0 0.0
        %983 = vmatprep.subr.mxu0 0.0
        %984 = vmatpush2.msra.mxu0 0.0
        %985 = vmatprep.mubr.f32.mxu0 0.0
        %986 = vmatmul.mubr.f32.gmra.mxu0 %v917
        %v987 = vpop.f32.mrf.mxu0
        %v988 = vadd.f32 0.0, %v987
        %v989 = vpop.f32.mrf.mxu0
        %990 = vmatprep.mubr.f32.mxu0 0.0
        %991 = vmatmul.mubr.f32.gmra.mxu0 %v919
        %v992 = vpop.f32.mrf.mxu0
        %v993 = vadd.f32 0.0, %v992
        %v994 = vpop.f32.mrf.mxu0
        %995 = vdwg.mxu0
        %v997 = vrot.slane %v988, 1
        %998 = vrot.lane.b32.xlu0 %v997, 32
        %v999 = vpop.permute.xlu0 %998
        %v1001 = vrot.slane %v988, 2
        %1002 = vrot.lane.b32.xlu0 %v1001, 64
        %v1003 = vpop.permute.xlu0 %1002
        %v1005 = vrot.slane %v988, 3
        %1006 = vrot.lane.b32.xlu0 %v1005, 96
        %v1007 = vpop.permute.xlu0 %1006
        %v1009 = vrot.slane %v988, 4
        %v1011 = vrot.slane %v988, 5
        %1012 = vrot.lane.b32.xlu0 %v1011, 32
        %v1013 = vpop.permute.xlu0 %1012
        %v1015 = vrot.slane %v988, 6
        %1016 = vrot.lane.b32.xlu0 %v1015, 64
        %v1017 = vpop.permute.xlu0 %1016
        %v1019 = vrot.slane %v988, 7
        %1020 = vrot.lane.b32.xlu0 %v1019, 96
        %v1021 = vpop.permute.xlu0 %1020
        %v1024 = vrot.slane %v993, 1
        %1025 = vrot.lane.b32.xlu0 %v1024, 32
        %v1026 = vpop.permute.xlu0 %1025
        %v1028 = vrot.slane %v993, 2
        %1029 = vrot.lane.b32.xlu0 %v1028, 64
        %v1030 = vpop.permute.xlu0 %1029
        %v1032 = vrot.slane %v993, 3
        %1033 = vrot.lane.b32.xlu0 %v1032, 96
        %v1034 = vpop.permute.xlu0 %1033
        %v1036 = vrot.slane %v993, 4
        %v1038 = vrot.slane %v993, 5
        %1039 = vrot.lane.b32.xlu0 %v1038, 32
        %v1040 = vpop.permute.xlu0 %1039
        %v1042 = vrot.slane %v993, 6
        %1043 = vrot.lane.b32.xlu0 %v1042, 64
        %v1044 = vpop.permute.xlu0 %1043
        %v1046 = vrot.slane %v993, 7
        %1047 = vrot.lane.b32.xlu0 %v1046, 96
        %v1048 = vpop.permute.xlu0 %1047
        %v1050 = vsel %vm820, %v988, %v999
        %v1051 = vsel %vm655, %v1050, %v1003
        %vm1052 = vcmask 785408
        %v1053 = vsel %vm1052, %v1051, %v1007
        %v1054 = vsel %vm820, %v1009, %v1013
        %v1055 = vsel %vm655, %v1054, %v1017
        %v1056 = vsel %vm1052, %v1055, %v1021
        %v1057 = vsel %vm820, %v993, %v1026
        %v1058 = vsel %vm655, %v1057, %v1030
        %v1059 = vsel %vm1052, %v1058, %v1034
        %v1060 = vsel %vm820, %v1036, %v1040
        %v1061 = vsel %vm655, %v1060, %v1044
        %v1062 = vsel %vm1052, %v1061, %v1048
        %v1063 = vpack.c.bf16 %v1053, %v1053
        %v1064 = vpack.c.bf16 %v1056, %v1056
        %v1065 = vpack.c.bf16 %v1059, %v1059
        %v1066 = vpack.c.bf16 %v1062, %v1062
        %v1067 = vld [vmem:[%s5] sm:$0xf]
        %v1068 = vld [vmem:[%s5 + $0x4] sm:$0xf]
        %v1069 = vld [vmem:[%s5 + $0x8] sm:$0xf]
        %v1070 = vld [vmem:[%s5 + $0xc] sm:$0xf]
        %v1071 = vld [vmem:[%s5 + $0x10] sm:$0xf]
        %v1072 = vld [vmem:[%s5 + $0x14] sm:$0xf]
        %v1073 = vld [vmem:[%s5 + $0x18] sm:$0xf]
        %v1074 = vld [vmem:[%s5 + $0x1c] sm:$0xf]
        %v1075 = vld [vmem:[%s5 + $0x20] sm:$0xf]
        %v1076 = vld [vmem:[%s5 + $0x24] sm:$0xf]
        %v1077 = vld [vmem:[%s5 + $0x28] sm:$0xf]
        %v1078 = vld [vmem:[%s5 + $0x2c] sm:$0xf]
        %v1079 = vld [vmem:[%s5 + $0x30] sm:$0xf]
        %v1080 = vld [vmem:[%s5 + $0x34] sm:$0xf]
        %v1081 = vld [vmem:[%s5 + $0x38] sm:$0xf]
        %v1082 = vld [vmem:[%s5 + $0x3c] sm:$0xf]
        %v1083 = vld [vmem:[%s5 + $0x40] sm:$0xf]
        %v1084 = vld [vmem:[%s5 + $0x44] sm:$0xf]
        %v1085 = vld [vmem:[%s5 + $0x48] sm:$0xf]
        %v1086 = vld [vmem:[%s5 + $0x4c] sm:$0xf]
        %v1087 = vld [vmem:[%s5 + $0x50] sm:$0xf]
        %v1088 = vld [vmem:[%s5 + $0x54] sm:$0xf]
        %v1089 = vld [vmem:[%s5 + $0x58] sm:$0xf]
        %v1090 = vld [vmem:[%s5 + $0x5c] sm:$0xf]
        %v1091 = vld [vmem:[%s5 + $0x60] sm:$0xf]
        %v1092 = vld [vmem:[%s5 + $0x64] sm:$0xf]
        %v1093 = vld [vmem:[%s5 + $0x68] sm:$0xf]
        %v1094 = vld [vmem:[%s5 + $0x6c] sm:$0xf]
        %v1095 = vld [vmem:[%s5 + $0x70] sm:$0xf]
        %v1096 = vld [vmem:[%s5 + $0x74] sm:$0xf]
        %v1097 = vld [vmem:[%s5 + $0x78] sm:$0xf]
        %v1098 = vld [vmem:[%s5 + $0x7c] sm:$0xf]
        %v1099 = vld [vmem:[%s5 + $0x80] sm:$0xf]
        %v1100 = vld [vmem:[%s5 + $0x84] sm:$0xf]
        %v1101 = vld [vmem:[%s5 + $0x88] sm:$0xf]
        %v1102 = vld [vmem:[%s5 + $0x8c] sm:$0xf]
        %v1103 = vld [vmem:[%s5 + $0x90] sm:$0xf]
        %v1104 = vld [vmem:[%s5 + $0x94] sm:$0xf]
        %v1105 = vld [vmem:[%s5 + $0x98] sm:$0xf]
        %v1106 = vld [vmem:[%s5 + $0x9c] sm:$0xf]
        %v1107 = vld [vmem:[%s5 + $0xa0] sm:$0xf]
        %v1108 = vld [vmem:[%s5 + $0xa4] sm:$0xf]
        %v1109 = vld [vmem:[%s5 + $0xa8] sm:$0xf]
        %v1110 = vld [vmem:[%s5 + $0xac] sm:$0xf]
        %v1111 = vld [vmem:[%s5 + $0xb0] sm:$0xf]
        %v1112 = vld [vmem:[%s5 + $0xb4] sm:$0xf]
        %v1113 = vld [vmem:[%s5 + $0xb8] sm:$0xf]
        %v1114 = vld [vmem:[%s5 + $0xbc] sm:$0xf]
        %v1115 = vld [vmem:[%s5 + $0xc0] sm:$0xf]
        %v1116 = vld [vmem:[%s5 + $0xc4] sm:$0xf]
        %v1117 = vld [vmem:[%s5 + $0xc8] sm:$0xf]
        %v1118 = vld [vmem:[%s5 + $0xcc] sm:$0xf]
        %v1119 = vld [vmem:[%s5 + $0xd0] sm:$0xf]
        %v1120 = vld [vmem:[%s5 + $0xd4] sm:$0xf]
        %v1121 = vld [vmem:[%s5 + $0xd8] sm:$0xf]
        %v1122 = vld [vmem:[%s5 + $0xdc] sm:$0xf]
        %v1123 = vld [vmem:[%s5 + $0xe0] sm:$0xf]
        %v1124 = vld [vmem:[%s5 + $0xe4] sm:$0xf]
        %v1125 = vld [vmem:[%s5 + $0xe8] sm:$0xf]
        %v1126 = vld [vmem:[%s5 + $0xec] sm:$0xf]
        %v1127 = vld [vmem:[%s5 + $0xf0] sm:$0xf]
        %v1128 = vld [vmem:[%s5 + $0xf4] sm:$0xf]
        %v1129 = vld [vmem:[%s5 + $0xf8] sm:$0xf]
        %v1130 = vld [vmem:[%s5 + $0xfc] sm:$0xf]
        %v1131 = vld [vmem:[%s6] sm:$0x1]
        %v1196 = vunpack.c.l.b16 %v1067
        %v1197 = vunpack.c.l.b16 %v1068
        %v1198 = vunpack.c.l.b16 %v1069
        %v1199 = vunpack.c.l.b16 %v1070
        %v1200 = vunpack.c.l.b16 %v1071
        %v1201 = vunpack.c.l.b16 %v1072
        %v1202 = vunpack.c.l.b16 %v1073
        %v1203 = vunpack.c.l.b16 %v1074
        %v1204 = vunpack.c.l.b16 %v1075
        %v1205 = vunpack.c.l.b16 %v1076
        %v1206 = vunpack.c.l.b16 %v1077
        %v1207 = vunpack.c.l.b16 %v1078
        %v1208 = vunpack.c.l.b16 %v1079
        %v1209 = vunpack.c.l.b16 %v1080
        %v1210 = vunpack.c.l.b16 %v1081
        %v1211 = vunpack.c.l.b16 %v1082
        %v1212 = vunpack.c.l.b16 %v1083
        %v1213 = vunpack.c.l.b16 %v1084
        %v1214 = vunpack.c.l.b16 %v1085
        %v1215 = vunpack.c.l.b16 %v1086
        %v1216 = vunpack.c.l.b16 %v1087
        %v1217 = vunpack.c.l.b16 %v1088
        %v1218 = vunpack.c.l.b16 %v1089
        %v1219 = vunpack.c.l.b16 %v1090
        %v1220 = vunpack.c.l.b16 %v1091
        %v1221 = vunpack.c.l.b16 %v1092
        %v1222 = vunpack.c.l.b16 %v1093
        %v1223 = vunpack.c.l.b16 %v1094
        %v1224 = vunpack.c.l.b16 %v1095
        %v1225 = vunpack.c.l.b16 %v1096
        %v1226 = vunpack.c.l.b16 %v1097
        %v1227 = vunpack.c.l.b16 %v1098
        %v1228 = vunpack.c.l.b16 %v1099
        %v1229 = vunpack.c.l.b16 %v1100
        %v1230 = vunpack.c.l.b16 %v1101
        %v1231 = vunpack.c.l.b16 %v1102
        %v1232 = vunpack.c.l.b16 %v1103
        %v1233 = vunpack.c.l.b16 %v1104
        %v1234 = vunpack.c.l.b16 %v1105
        %v1235 = vunpack.c.l.b16 %v1106
        %v1236 = vunpack.c.l.b16 %v1107
        %v1237 = vunpack.c.l.b16 %v1108
        %v1238 = vunpack.c.l.b16 %v1109
        %v1239 = vunpack.c.l.b16 %v1110
        %v1240 = vunpack.c.l.b16 %v1111
        %v1241 = vunpack.c.l.b16 %v1112
        %v1242 = vunpack.c.l.b16 %v1113
        %v1243 = vunpack.c.l.b16 %v1114
        %v1244 = vunpack.c.l.b16 %v1115
        %v1245 = vunpack.c.l.b16 %v1116
        %v1246 = vunpack.c.l.b16 %v1117
        %v1247 = vunpack.c.l.b16 %v1118
        %v1248 = vunpack.c.l.b16 %v1119
        %v1249 = vunpack.c.l.b16 %v1120
        %v1250 = vunpack.c.l.b16 %v1121
        %v1251 = vunpack.c.l.b16 %v1122
        %v1252 = vunpack.c.l.b16 %v1123
        %v1253 = vunpack.c.l.b16 %v1124
        %v1254 = vunpack.c.l.b16 %v1125
        %v1255 = vunpack.c.l.b16 %v1126
        %v1256 = vunpack.c.l.b16 %v1127
        %v1257 = vunpack.c.l.b16 %v1128
        %v1258 = vunpack.c.l.b16 %v1129
        %v1259 = vunpack.c.l.b16 %v1130
        %v1260 = vpack.c.b16 %v1197, %v1196
        %v1261 = vpack.c.b16 %v1199, %v1198
        %v1262 = vpack.c.b16 %v1201, %v1200
        %v1263 = vpack.c.b16 %v1203, %v1202
        %v1264 = vpack.c.b16 %v1205, %v1204
        %v1265 = vpack.c.b16 %v1207, %v1206
        %v1266 = vpack.c.b16 %v1209, %v1208
        %v1267 = vpack.c.b16 %v1211, %v1210
        %v1268 = vpack.c.b16 %v1213, %v1212
        %v1269 = vpack.c.b16 %v1215, %v1214
        %v1270 = vpack.c.b16 %v1217, %v1216
        %v1271 = vpack.c.b16 %v1219, %v1218
        %v1272 = vpack.c.b16 %v1221, %v1220
        %v1273 = vpack.c.b16 %v1223, %v1222
        %v1274 = vpack.c.b16 %v1225, %v1224
        %v1275 = vpack.c.b16 %v1227, %v1226
        %v1276 = vpack.c.b16 %v1229, %v1228
        %v1277 = vpack.c.b16 %v1231, %v1230
        %v1278 = vpack.c.b16 %v1233, %v1232
        %v1279 = vpack.c.b16 %v1235, %v1234
        %v1280 = vpack.c.b16 %v1237, %v1236
        %v1281 = vpack.c.b16 %v1239, %v1238
        %v1282 = vpack.c.b16 %v1241, %v1240
        %v1283 = vpack.c.b16 %v1243, %v1242
        %v1284 = vpack.c.b16 %v1245, %v1244
        %v1285 = vpack.c.b16 %v1247, %v1246
        %v1286 = vpack.c.b16 %v1249, %v1248
        %v1287 = vpack.c.b16 %v1251, %v1250
        %v1288 = vpack.c.b16 %v1253, %v1252
        %v1289 = vpack.c.b16 %v1255, %v1254
        %v1290 = vpack.c.b16 %v1257, %v1256
        %v1291 = vpack.c.b16 %v1259, %v1258
        %1324 = vmatprep.subr.bf16.mxu0 0
        %1325 = vmatpush1.bf16.msra.mxu0 %v1267
        %1326 = vmatprep.subr.bf16.mxu0 0
        %1327 = vmatpush1.bf16.msra.mxu0 %v1266
        %1328 = vmatprep.subr.bf16.mxu0 0
        %1329 = vmatpush1.bf16.msra.mxu0 %v1265
        %1330 = vmatprep.subr.bf16.mxu0 0
        %1331 = vmatpush1.bf16.msra.mxu0 %v1264
        %1332 = vmatprep.subr.bf16.mxu0 0
        %1333 = vmatpush1.bf16.msra.mxu0 %v1263
        %1334 = vmatprep.subr.bf16.mxu0 0
        %1335 = vmatpush1.bf16.msra.mxu0 %v1262
        %1336 = vmatprep.subr.bf16.mxu0 0
        %1337 = vmatpush1.bf16.msra.mxu0 %v1261
        %1338 = vmatprep.subr.bf16.mxu0 0
        %1339 = vmatpush1.bf16.msra.mxu0 %v1260
        %1340 = vmatprep.subr.bf16.mxu0 0
        %1341 = vmatpush2.bf16.msra.mxu0 %v1275
        %1342 = vmatprep.subr.bf16.mxu0 0
        %1343 = vmatpush2.bf16.msra.mxu0 %v1274
        %1344 = vmatprep.subr.bf16.mxu0 0
        %1345 = vmatpush2.bf16.msra.mxu0 %v1273
        %1346 = vmatprep.subr.bf16.mxu0 0
        %1347 = vmatpush2.bf16.msra.mxu0 %v1272
        %1348 = vmatprep.subr.bf16.mxu0 0
        %1349 = vmatpush2.bf16.msra.mxu0 %v1271
        %1350 = vmatprep.subr.bf16.mxu0 0
        %1351 = vmatpush2.bf16.msra.mxu0 %v1270
        %1352 = vmatprep.subr.bf16.mxu0 0
        %1353 = vmatpush2.bf16.msra.mxu0 %v1269
        %1354 = vmatprep.subr.bf16.mxu0 0
        %1355 = vmatpush2.bf16.msra.mxu0 %v1268
        %1356 = vmatprep.mubr.bf16.mxu0 %v1064
        %1357 = vmatmul.mubr.bf16.gmra.mxu0 %v1063
        %v1358 = vpop.f32.mrf.mxu0
        %v1359 = vadd.f32 %v1131, %v1358
        %v1360 = vpop.f32.mrf.mxu0
        %v1361 = vpop.f32.mrf.mxu0
        %v1362 = vpop.f32.mrf.mxu0
        %1363 = vdwg.mxu0
        %1364 = vmatprep.subr.bf16.mxu0 0
        %1365 = vmatpush1.bf16.msra.mxu0 %v1283
        %1366 = vmatprep.subr.bf16.mxu0 0
        %1367 = vmatpush1.bf16.msra.mxu0 %v1282
        %1368 = vmatprep.subr.bf16.mxu0 0
        %1369 = vmatpush1.bf16.msra.mxu0 %v1281
        %1370 = vmatprep.subr.bf16.mxu0 0
        %1371 = vmatpush1.bf16.msra.mxu0 %v1280
        %1372 = vmatprep.subr.bf16.mxu0 0
        %1373 = vmatpush1.bf16.msra.mxu0 %v1279
        %1374 = vmatprep.subr.bf16.mxu0 0
        %1375 = vmatpush1.bf16.msra.mxu0 %v1278
        %1376 = vmatprep.subr.bf16.mxu0 0
        %1377 = vmatpush1.bf16.msra.mxu0 %v1277
        %1378 = vmatprep.subr.bf16.mxu0 0
        %1379 = vmatpush1.bf16.msra.mxu0 %v1276
        %1380 = vmatprep.subr.bf16.mxu0 0
        %1381 = vmatpush2.bf16.msra.mxu0 %v1291
        %1382 = vmatprep.subr.bf16.mxu0 0
        %1383 = vmatpush2.bf16.msra.mxu0 %v1290
        %1384 = vmatprep.subr.bf16.mxu0 0
        %1385 = vmatpush2.bf16.msra.mxu0 %v1289
        %1386 = vmatprep.subr.bf16.mxu0 0
        %1387 = vmatpush2.bf16.msra.mxu0 %v1288
        %1388 = vmatprep.subr.bf16.mxu0 0
        %1389 = vmatpush2.bf16.msra.mxu0 %v1287
        %1390 = vmatprep.subr.bf16.mxu0 0
        %1391 = vmatpush2.bf16.msra.mxu0 %v1286
        %1392 = vmatprep.subr.bf16.mxu0 0
        %1393 = vmatpush2.bf16.msra.mxu0 %v1285
        %1394 = vmatprep.subr.bf16.mxu0 0
        %1395 = vmatpush2.bf16.msra.mxu0 %v1284
        %1396 = vmatprep.mubr.bf16.mxu0 %v1066
        %1397 = vmatmul.mubr.bf16.gmra.mxu0 %v1065
        %v1398 = vpop.f32.mrf.mxu0
        %v1399 = vadd.f32 %v1359, %v1398
        %v1400 = vpop.f32.mrf.mxu0
        %v1401 = vpop.f32.mrf.mxu0
        %v1402 = vpop.f32.mrf.mxu0
        %1403 = vdwg.mxu0
        %v1404 = vmax.f32 %v1399, 0.0
        %v1405 = vpack.c.bf16 %v1404, %v1404
        %v1406 = vld [vmem:[%s7] sm:$0xf]
        %v1407 = vld [vmem:[%s7 + $0x4] sm:$0xf]
        %v1408 = vld [vmem:[%s8] sm:$0x1]
        %v1411 = vunpack.c.l.b16 %v1406
        %v1412 = vunpack.c.l.b16 %v1407
        %v1413 = vpack.c.b16 %v1412, %v1411
        %v1416 = vsel %vm815, %v1405, 0
        %1418 = vmatprep.subr.bf16.mxu0 0
        %1419 = vmatpush1.bf16.msra.mxu0 0
        %1420 = vmatprep.subr.bf16.mxu0 0
        %1421 = vmatpush1.bf16.msra.mxu0 0
        %1422 = vmatprep.subr.bf16.mxu0 0
        %1423 = vmatpush1.bf16.msra.mxu0 0
        %1424 = vmatprep.subr.bf16.mxu0 0
        %1425 = vmatpush1.bf16.msra.mxu0 0
        %1426 = vmatprep.subr.bf16.mxu0 0
        %1427 = vmatpush1.bf16.msra.mxu0 0
        %1428 = vmatprep.subr.bf16.mxu0 0
        %1429 = vmatpush1.bf16.msra.mxu0 0
        %1430 = vmatprep.subr.bf16.mxu0 0
        %1431 = vmatpush1.bf16.msra.mxu0 0
        %1432 = vmatprep.subr.bf16.mxu0 0
        %1433 = vmatpush1.bf16.msra.mxu0 %v1413
        %1434 = vmatprep.subr.bf16.mxu0 0
        %1435 = vmatpush2.bf16.msra.mxu0 0
        %1436 = vmatprep.subr.bf16.mxu0 0
        %1437 = vmatpush2.bf16.msra.mxu0 0
        %1438 = vmatprep.subr.bf16.mxu0 0
        %1439 = vmatpush2.bf16.msra.mxu0 0
        %1440 = vmatprep.subr.bf16.mxu0 0
        %1441 = vmatpush2.bf16.msra.mxu0 0
        %1442 = vmatprep.subr.bf16.mxu0 0
        %1443 = vmatpush2.bf16.msra.mxu0 0
        %1444 = vmatprep.subr.bf16.mxu0 0
        %1445 = vmatpush2.bf16.msra.mxu0 0
        %1446 = vmatprep.subr.bf16.mxu0 0
        %1447 = vmatpush2.bf16.msra.mxu0 0
        %1448 = vmatprep.subr.bf16.mxu0 0
        %1449 = vmatpush2.bf16.msra.mxu0 0
        %1450 = vmatprep.mubr.bf16.mxu0 0
        %1451 = vmatmul.mubr.bf16.gmra.mxu0 %v1416
        %v1452 = vpop.f32.mrf.mxu0
        %v1453 = vadd.f32 %v1408, %v1452
        %v1454 = vpop.f32.mrf.mxu0
        %v1455 = vpop.f32.mrf.mxu0
        %v1456 = vpop.f32.mrf.mxu0
        %1457 = vdwg.mxu0
        %v1458 = vmax.f32 %v1453, 0.0
        %v1459 = vpack.c.bf16 %v1458, %v1458
        %v1460 = vld [vmem:[%s9] sm:$0xf]
        %v1461 = vld [vmem:[%s9 + $0x4] sm:$0xf]
        %v1462 = vld [vmem:[%s10] sm:$0x1]
        %v1465 = vunpack.c.l.b16 %v1460
        %v1466 = vunpack.c.l.b16 %v1461
        %v1467 = vpack.c.b16 %v1466, %v1465
        %v1470 = vsel %vm815, %v1459, 0
        %1472 = vmatprep.subr.bf16.mxu0 0
        %1473 = vmatpush1.bf16.msra.mxu0 0
        %1474 = vmatprep.subr.bf16.mxu0 0
        %1475 = vmatpush1.bf16.msra.mxu0 0
        %1476 = vmatprep.subr.bf16.mxu0 0
        %1477 = vmatpush1.bf16.msra.mxu0 0
        %1478 = vmatprep.subr.bf16.mxu0 0
        %1479 = vmatpush1.bf16.msra.mxu0 0
        %1480 = vmatprep.subr.bf16.mxu0 0
        %1481 = vmatpush1.bf16.msra.mxu0 0
        %1482 = vmatprep.subr.bf16.mxu0 0
        %1483 = vmatpush1.bf16.msra.mxu0 0
        %1484 = vmatprep.subr.bf16.mxu0 0
        %1485 = vmatpush1.bf16.msra.mxu0 0
        %1486 = vmatprep.subr.bf16.mxu0 0
        %1487 = vmatpush1.bf16.msra.mxu0 %v1467
        %1488 = vmatprep.subr.bf16.mxu0 0
        %1489 = vmatpush2.bf16.msra.mxu0 0
        %1490 = vmatprep.subr.bf16.mxu0 0
        %1491 = vmatpush2.bf16.msra.mxu0 0
        %1492 = vmatprep.subr.bf16.mxu0 0
        %1493 = vmatpush2.bf16.msra.mxu0 0
        %1494 = vmatprep.subr.bf16.mxu0 0
        %1495 = vmatpush2.bf16.msra.mxu0 0
        %1496 = vmatprep.subr.bf16.mxu0 0
        %1497 = vmatpush2.bf16.msra.mxu0 0
        %1498 = vmatprep.subr.bf16.mxu0 0
        %1499 = vmatpush2.bf16.msra.mxu0 0
        %1500 = vmatprep.subr.bf16.mxu0 0
        %1501 = vmatpush2.bf16.msra.mxu0 0
        %1502 = vmatprep.subr.bf16.mxu0 0
        %1503 = vmatpush2.bf16.msra.mxu0 0
        %1504 = vmatprep.mubr.bf16.mxu0 0
        %1505 = vmatmul.mubr.bf16.gmra.mxu0 %v1470
        %v1506 = vpop.f32.mrf.mxu0
        %v1507 = vadd.f32 %v1462, %v1506
        %v1508 = vpop.f32.mrf.mxu0
        %v1509 = vpop.f32.mrf.mxu0
        %v1510 = vpop.f32.mrf.mxu0
        %1511 = vdwg.mxu0
        %vm1512 = vcmask 57344
        %1513 = vst.msk [vmem:[%s378] sm:$0x1] %vm1512, %v1507
        %s1514 = sand.u32 %s269, 1
        %s1515 = scalar_lea.sflag [#allocation3], %s1514
        %s1516 = sand.u32 %s269, 1
        %s1517 = scalar_lea.vmem [#allocation2], %s1516
        // Predicated region
        $region65: #{mesh_conv_encoder_forward.1} parent=63 // pred_check
          %p1518 = pneg %p279
        $region66: #{mesh_conv_encoder_forward.1} parent=63 // pred_check_branch
          %1520 = sbr.rel (%p1518) target = $region68
        $region67: #{mesh_conv_encoder_forward.1} parent=63 // pred_region
          %s1522 = ssub.s32 16, 16
          %1523 = vsyncadd %s1515, %s1522
          %s1524 = smul.addr %s25, 16
          %s1525 = scalar_lea.hbm %s11, %s1524
          %s1527 = sshll.u32 %s1517, 4
          %s1528 = int_to_ptr.vmem [resolvable:$true] %s1527
          %1530 = dma.vmem_to_hbm [thread:$0]  %s1528, 16, %s1525, %s1515
        $region68: #{mesh_conv_encoder_forward.1} parent=63 // pred_fallthru
          _
      $region64: #{mesh_conv_encoder_forward.1} parent=5 // pred_fallthru
        _
      %p1531 = scmp.le.s32.totalorder 2, %s20
      // Predicated region
      $region69: #{mesh_conv_encoder_forward.1} parent=5 // pred_check
        %p1532 = pneg %p1531
      $region70: #{mesh_conv_encoder_forward.1} parent=5 // pred_check_branch
        %1534 = sbr.rel (%p1532) target = $region72
      $region71: #{mesh_conv_encoder_forward.1} parent=5 // pred_region
        %s1535 = ssub.s32 %s20, 2
        // Predicated region
        $region73: #{mesh_conv_encoder_forward.1} parent=71 // pred_check
          %p1536 = pneg %p285
        $region74: #{mesh_conv_encoder_forward.1} parent=71 // pred_check_branch
          %1538 = sbr.rel (%p1536) target = $region76
        $region75: #{mesh_conv_encoder_forward.1} parent=71 // pred_region
          %s1539 = sand.u32 %s270, 1
          %s1540 = scalar_lea.sflag [#allocation3], %s1539
          %s1541 = sand.u32 %s270, 1
          %s1542 = scalar_lea.vmem [#allocation2], %s1541
          %1543 = dma.done %s1540, 16
        $region76: #{mesh_conv_encoder_forward.1} parent=71 // pred_fallthru
          _
      $region72: #{mesh_conv_encoder_forward.1} parent=5 // pred_fallthru
        _
    $region6: #{mesh_conv_encoder_forward.1} parent=1 // loop_footer
      %s24 = sadd.s32 1, %s20
    $region7: #{mesh_conv_encoder_forward.1} parent=1 // loop_footer_branch
      %19 = sbr.rel target = $region3
    $region8: #{mesh_conv_encoder_forward.1} parent=1 // loop_exit
      _
    %1544 = vsyncpa [#allocation3], 1
    %s1545 = scalar_lea.sflag [#allocation3], 1
    %1546 = vsyncpa %s1545, 1

</llo_original>
